<compile_context>
chip_gen: v7x
topology: tpu7x:2x2x1
jax: 0.10.0
libtpu: 0.0.40
codegen_flags: <defaults>
</compile_context>

<pallas_src>
import functools

import jax
import jax.numpy as jnp
from jax import lax
from jax.experimental import pallas as pl
from jax.experimental.pallas import tpu as pltpu

_BIG = 1e16  # sentinel "infinite" squared distance for padded target points


def _pad_and_tile(n):
    """Return (padded point count, tile size) with n_pad % tile == 0."""
    if n <= 128:
        return 128, 128
    tile = 256                      # fills the v6e/v7x 256-wide MXU
    n_pad = ((n + tile - 1) // tile) * tile
    return n_pad, tile


def _quat_coeffs(w, x, y, z):
    """Row-major 3x3 rotation-matrix coefficients from a (unit) quaternion."""
    return (2 * w * w + 2 * x * x - 1, 2 * x * y - 2 * w * z, 2 * x * z + 2 * w * y,
            2 * x * y + 2 * w * z, 2 * w * w + 2 * y * y - 1, 2 * y * z - 2 * w * x,
            2 * x * z - 2 * w * y, 2 * y * z + 2 * w * x, 2 * w * w + 2 * z * z - 1)


def _avg_dist_kernel(cls_ref, qp_ref, qt_ref, sv_ref, pts_ref, out_ref,
                     a_scr, b_scr, *, margin, inv_norm, n_actual, n_pad, tile):
    """One grid step == one batch sample.

    cls_ref : (B,)          int32 SMEM  (scalar prefetch; drives points BlockSpec)
    qp_ref  : (4*B,)        f32   SMEM  predicted quaternion of selected class
    qt_ref  : (4*B,)        f32   SMEM  target quaternion of selected class
    sv_ref  : (2*B,)        f32   SMEM  [sym_0, valid_0, sym_1, valid_1, ...]
    pts_ref : (1, 3, N_pad) f32   VMEM  selected-class points, coords on sublanes
    out_ref : (1, 1, 1)     f32   VMEM  per-sample partial loss
    a_scr   : (8, N_pad)    f32   VMEM  augmented target-side matmul operand
    b_scr   : (8, N_pad)    f32   VMEM  augmented pred-side matmul operand
    """
    n = pl.program_id(0)
    sym = sv_ref[2 * n + 0]
    valid = sv_ref[2 * n + 1]

    # Each sample owns its own output block -> always write (zero by default).
    out_ref[...] = jnp.zeros_like(out_ref)

    @pl.when(valid > 0.0)
    def _valid_body():
        # rotation coefficients (scalar math, cheap)
        a00, a01, a02, a10, a11, a12, a20, a21, a22 = _quat_coeffs(
            qp_ref[4 * n + 0], qp_ref[4 * n + 1],
            qp_ref[4 * n + 2], qp_ref[4 * n + 3])
        b00, b01, b02, b10, b11, b12, b20, b21, b22 = _quat_coeffs(
            qt_ref[4 * n + 0], qt_ref[4 * n + 1],
            qt_ref[4 * n + 2], qt_ref[4 * n + 3])

        px = pts_ref[0, 0:1, :]                    # (1, N_pad) lane-major rows
        py = pts_ref[0, 1:2, :]
        pz = pts_ref[0, 2:3, :]

        # Rotated points (both rotations), lane-major (1, N_pad) rows.
        xp = a00 * px + a01 * py + a02 * pz
        yp = a10 * px + a11 * py + a12 * pz
        zp = a20 * px + a21 * py + a22 * pz
        xt = b00 * px + b01 * py + b02 * pz
        yt = b10 * px + b11 * py + b12 * pz
        zt = b20 * px + b21 * py + b22 * pz

        lane = lax.broadcasted_iota(jnp.int32, (1, n_pad), 1)
        in_range = lane < n_actual                 # mask out padded points

        # ---------------- non-symmetric (ADD): matched points, O(N) --------
        @pl.when(sym <= 0.0)
        def _add_branch():
            d = (xp - xt) ** 2 + (yp - yt) ** 2 + (zp - zt) ** 2   # (1, N_pad)
            loss = jnp.where(in_range, jnp.maximum(0.5 * d - margin, 0.0), 0.0)
            out_ref[...] = (jnp.sum(loss, keepdims=True) * inv_norm
                            ).reshape(1, 1, 1)

        # ---------------- symmetric (ADD-S): MXU cross-term, tiled ---------
        @pl.when(sym > 0.0)
        def _adds_branch():
            # squared norms of the *rotated* points (exact, no orthogonality
            # assumption); padded targets get a huge norm so they never win
            # the min.
            r_t = xt * xt + yt * yt + zt * zt + jnp.where(in_range, 0.0, _BIG)
            r_p = xp * xp + yp * yp + zp * zp
            ones = jnp.ones((1, n_pad), jnp.float32)
            zeros3 = jnp.zeros((3, n_pad), jnp.float32)

            # A (target / j side): D gets r_t[j] and -2*Xt[j].Xp[i]
            a_scr[0:1, :] = -2.0 * xt
            a_scr[1:2, :] = -2.0 * yt
            a_scr[2:3, :] = -2.0 * zt
            a_scr[3:4, :] = r_t
            a_scr[4:5, :] = ones
            a_scr[5:8, :] = zeros3
            # B (pred / i side): D gets r_p[i]
            b_scr[0:1, :] = xp
            b_scr[1:2, :] = yp
            b_scr[2:3, :] = zp
            b_scr[3:4, :] = ones
            b_scr[4:5, :] = r_p
            b_scr[5:8, :] = zeros3

            num_tiles = n_pad // tile

            def i_body(ic, acc):                             # acc: (1, 1) f32
                i_off = pl.multiple_of(ic * tile, tile)
                b_tile = b_scr[:, pl.ds(i_off, tile)]        # (8, TI)

                def j_body(jc, mrow):                        # mrow: (1, TI)
                    j_off = pl.multiple_of(jc * tile, tile)
                    a_tile = a_scr[:, pl.ds(j_off, tile)]    # (8, TK)
                    # D[j, i] = ||Xp_i - Xt_j||^2  (one MXU pass, K = 8)
                    dmat = lax.dot_general(
                        a_tile, b_tile,
                        dimension_numbers=(((0,), (0,)), ((), ())),
                        preferred_element_type=jnp.float32)  # (TK, TI)
                    return jnp.minimum(mrow,
                                       jnp.min(dmat, axis=0, keepdims=True))

                mrow = lax.fori_loop(
                    0, num_tiles, j_body,
                    jnp.full((1, tile), _BIG, dtype=jnp.float32))  # (1, TI)

                lane_i = lax.broadcasted_iota(jnp.int32, (1, tile), 1) + i_off
                loss_row = jnp.where(lane_i < n_actual,
                                     jnp.maximum(0.5 * mrow - margin, 0.0),
                                     0.0)
                return acc + jnp.sum(loss_row, keepdims=True)

            total = lax.fori_loop(0, num_tiles, i_body,
                                  jnp.zeros((1, 1), jnp.float32))
            out_ref[...] = (total * inv_norm).reshape(1, 1, 1)


class AverageDistanceLoss:
    """JAX/Pallas port of the PyTorch AverageDistanceLoss module (forward)."""

    def __init__(self, num_classes, margin):
        self.num_classes = int(num_classes)
        self.margin = float(margin)

    def __call__(self, poses_pred, poses_target, poses_weight, points, symmetry):
        C = self.num_classes
        assert points.shape[0] == symmetry.shape[0] == C
        assert poses_pred.shape[-1] == C * 4
        assert poses_pred.shape == poses_target.shape

        B = poses_pred.shape[0]
        N = points.shape[1]

        # -------- glue: per-sample class selection & quaternion gather -----
        w4 = poses_weight.reshape(B, C, 4)
        has = w4[:, :, 0] > 0
        valid = jnp.any(has, axis=1)
        cls_ids = jnp.argmax(has, axis=1).astype(jnp.int32)  # first positive class
        bidx = jnp.arange(B)
        qp = poses_pred.reshape(B, C, 4)[bidx, cls_ids].astype(jnp.float32)
        qt = poses_target.reshape(B, C, 4)[bidx, cls_ids].astype(jnp.float32)
        sym_sel = symmetry[cls_ids].astype(jnp.float32)
        val_f = valid.astype(jnp.float32)

        # sort batch by class: consecutive grid steps hit the same points block
        # and skip the re-DMA; the final sum is order invariant.
        order = jnp.argsort(cls_ids)
        cls_s = cls_ids[order]
        qp_flat = qp[order].reshape(-1)                       # (4B,) 1D SMEM
        qt_flat = qt[order].reshape(-1)                       # (4B,)
        sv_flat = jnp.stack([sym_sel[order], val_f[order]], axis=1).reshape(-1)

        # -------- points: lane-major (C, 3, N_pad), zero-padded ------------
        n_pad, tile = _pad_and_tile(N)
        pts_3n = jnp.transpose(points.astype(jnp.float32), (0, 2, 1))  # (C,3,N)
        if n_pad != N:
            pts_3n = jnp.pad(pts_3n, ((0, 0), (0, 0), (0, n_pad - N)))

        kernel = functools.partial(
            _avg_dist_kernel, margin=self.margin,
            inv_norm=1.0 / float(B * N), n_actual=N, n_pad=n_pad, tile=tile)

        # TODO(synk): on single-TC v5e/v6e, batching several samples per grid
        #             step (or keeping all C*N points VMEM-resident) would
        #             amortise the ~0.35us per-step overhead; not done here.
        per_sample = pl.pallas_call(
            kernel,
            out_shape=jax.ShapeDtypeStruct((B, 1, 1), jnp.float32),
            grid_spec=pltpu.PrefetchScalarGridSpec(
                num_scalar_prefetch=1,   # cls_s -> SMEM, drives points index_map
                grid=(B,),
                in_specs=[
                    pl.BlockSpec(memory_space=pltpu.MemorySpace.SMEM),  # qp (4B,)
                    pl.BlockSpec(memory_space=pltpu.MemorySpace.SMEM),  # qt (4B,)
                    pl.BlockSpec(memory_space=pltpu.MemorySpace.SMEM),  # sym/valid
                    pl.BlockSpec((1, 3, n_pad), lambda n, cls: (cls[n], 0, 0)),
                ],
                out_specs=pl.BlockSpec((1, 1, 1), lambda n, cls: (n, 0, 0)),
                scratch_shapes=[pltpu.VMEM((8, n_pad), jnp.float32),
                                pltpu.VMEM((8, n_pad), jnp.float32)],
            ),
            compiler_params=pltpu.CompilerParams(
                dimension_semantics=("parallel",),
                vmem_limit_bytes=32 * 1024 * 1024),
        )(cls_s, qp_flat, qt_flat, sv_flat, pts_3n)

        return jnp.sum(per_sample)


# ------------------------- pure-JAX reference ------------------------------
def _quat_to_mat(q):
    w, x, y, z = q[..., 0], q[..., 1], q[..., 2], q[..., 3]
    r0 = jnp.stack([2*w*w + 2*x*x - 1, 2*x*y - 2*w*z, 2*x*z + 2*w*y], -1)
    r1 = jnp.stack([2*x*y + 2*w*z, 2*w*w + 2*y*y - 1, 2*y*z - 2*w*x], -1)
    r2 = jnp.stack([2*x*z - 2*w*y, 2*y*z + 2*w*x, 2*w*w + 2*z*z - 1], -1)
    return jnp.stack([r0, r1, r2], -2)


def _reference_loss(poses_pred, poses_target, poses_weight, points, symmetry,
                    num_classes, margin):
    B = poses_pred.shape[0]
    C = num_classes
    N = points.shape[1]
    w4 = poses_weight.reshape(B, C, 4)
    has = w4[:, :, 0] > 0
    valid = jnp.any(has, axis=1).astype(jnp.float32)
    cls = jnp.argmax(has, axis=1)
    bidx = jnp.arange(B)
    Rp = _quat_to_mat(poses_pred.reshape(B, C, 4)[bidx, cls])
    Rt = _quat_to_mat(poses_target.reshape(B, C, 4)[bidx, cls])
    pts = points[cls]                                        # (B, N, 3)
    Xp = jnp.einsum('bij,bnj->bni', Rp, pts)
    Xt = jnp.einsum('bij,bnj->bni', Rt, pts)
    d_ns = jnp.sum((Xp - Xt) ** 2, -1)                       # (B, N)
    D = jnp.sum((Xp[:, :, None, :] - Xt[:, None, :, :]) ** 2, -1)  # (B, N, N)
    d_s = jnp.min(D, axis=2)
    sym_sel = symmetry[cls] > 0
    d = jnp.where(sym_sel[:, None], d_s, d_ns)
    per = jnp.maximum(0.5 * d - margin, 0.0) * valid[:, None]
    return jnp.sum(per) / (B * N)


if __name__ == "__main__":
    B, C, N = 3, 4, 200          # N not a multiple of 128 -> exercises padding
    margin = 0.001

    key = jax.random.PRNGKey(0)
    k1, k2, k3 = jax.random.split(key, 3)

    qp_all = jax.random.normal(k1, (B, C, 4), dtype=jnp.float32)
    qp_all = qp_all / jnp.linalg.norm(qp_all, axis=-1, keepdims=True)
    qt_all = jax.random.normal(k2, (B, C, 4), dtype=jnp.float32)
    qt_all = qt_all / jnp.linalg.norm(qt_all, axis=-1, keepdims=True)
    poses_pred = qp_all.reshape(B, C * 4)
    poses_target = qt_all.reshape(B, C * 4)

    # sample 0 -> class 2 (non-symmetric), sample 1 -> class 1 (symmetric),
    # sample 2 -> no positive weight (invalid: contributes zero)
    poses_weight = jnp.zeros((B, C * 4), jnp.float32)
    poses_weight = poses_weight.at[0, 4 * 2:4 * 2 + 4].set(1.0)
    poses_weight = poses_weight.at[1, 4 * 1:4 * 1 + 4].set(1.0)

    points = jax.random.uniform(k3, (C, N, 3), dtype=jnp.float32,
                                minval=-0.1, maxval=0.1)
    symmetry = jnp.array([0.0, 1.0, 0.0, 1.0], dtype=jnp.float32)

    loss_mod = AverageDistanceLoss(num_classes=C, margin=margin)
    loss = loss_mod(poses_pred, poses_target, poses_weight, points, symmetry)
    loss = jax.block_until_ready(loss)

    ref = _reference_loss(poses_pred, poses_target, poses_weight, points,
                          symmetry, C, margin)
    assert jnp.allclose(loss, ref, atol=1e-5, rtol=1e-5), (loss, ref)

    print("KERNEL_OK")
</pallas_src>

<mosaic_0001>
module attributes {stable_mosaic.version = 11 : i64} {
  func.func @_avg_dist_kernel(%arg0: i32, %arg1: memref<3xi32, #tpu.memory_space<smem>>, %arg2: memref<12xf32, #tpu.memory_space<smem>>, %arg3: memref<12xf32, #tpu.memory_space<smem>>, %arg4: memref<6xf32, #tpu.memory_space<smem>>, %arg5: memref<1x3x256xf32, #tpu.memory_space<vmem>>, %arg6: memref<1x1x1xf32, #tpu.memory_space<vmem>>, %arg7: memref<8x256xf32, #tpu.memory_space<vmem>>, %arg8: memref<8x256xf32, #tpu.memory_space<vmem>>) attributes {dimension_semantics = [#tpu.dimension_semantics<parallel>], iteration_bounds = array<i64: 3>, scalar_prefetch = 1 : i64, scratch_operands = 2 : i64, tpu.core_type = #tpu.core_type<tc>, window_params = [{transform_indices = @transform_0, window_bounds = array<i64: 12>}, {transform_indices = @transform_1, window_bounds = array<i64: 12>}, {transform_indices = @transform_2, window_bounds = array<i64: 6>}, {transform_indices = @transform_3, window_bounds = array<i64: 1, 3, 256>}, {transform_indices = @transform_4, window_bounds = array<i64: 1, 1, 1>}]} {
    %c2_i32 = arith.constant 2 : i32
    %0 = arith.muli %c2_i32, %arg0 : i32
    %c0_i32 = arith.constant 0 : i32
    %1 = arith.addi %0, %c0_i32 : i32
    %2 = arith.index_cast %1 : i32 to index
    %3 = memref.load %arg4[%2] : memref<6xf32, #tpu.memory_space<smem>>
    %c2_i32_0 = arith.constant 2 : i32
    %4 = arith.muli %c2_i32_0, %arg0 : i32
    %c1_i32 = arith.constant 1 : i32
    %5 = arith.addi %4, %c1_i32 : i32
    %6 = arith.index_cast %5 : i32 to index
    %7 = memref.load %arg4[%6] : memref<6xf32, #tpu.memory_space<smem>>
    %cst = arith.constant 0.000000e+00 : f32
    %8 = vector.broadcast %cst : f32 to vector<1x1x1xf32>
    %c0 = arith.constant 0 : index
    %c0_1 = arith.constant 0 : index
    %c0_2 = arith.constant 0 : index
    %9 = vector.load %arg6[%c0, %c0_1, %c0_2] : memref<1x1x1xf32, #tpu.memory_space<vmem>>, vector<1x1x1xf32>
    tpu.vector_store %arg6[%c0, %c0_1, %c0_2], %8 {strides = array<i32>} : memref<1x1x1xf32, #tpu.memory_space<vmem>>, vector<1x1x1xf32>,
    %cst_3 = arith.constant 0.000000e+00 : f32
    %10 = arith.cmpf ogt, %7, %cst_3 : f32
    %11 = arith.extui %10 : i1 to i32
    %c0_i32_4 = arith.constant 0 : i32
    %12 = arith.cmpi ne, %11, %c0_i32_4 : i32
    scf.if %12 {
      %c4_i32 = arith.constant 4 : i32
      %13 = arith.muli %c4_i32, %arg0 : i32
      %c0_i32_5 = arith.constant 0 : i32
      %14 = arith.addi %13, %c0_i32_5 : i32
      %15 = arith.index_cast %14 : i32 to index
      %16 = memref.load %arg2[%15] : memref<12xf32, #tpu.memory_space<smem>>
      %c4_i32_6 = arith.constant 4 : i32
      %17 = arith.muli %c4_i32_6, %arg0 : i32
      %c1_i32_7 = arith.constant 1 : i32
      %18 = arith.addi %17, %c1_i32_7 : i32
      %19 = arith.index_cast %18 : i32 to index
      %20 = memref.load %arg2[%19] : memref<12xf32, #tpu.memory_space<smem>>
      %c4_i32_8 = arith.constant 4 : i32
      %21 = arith.muli %c4_i32_8, %arg0 : i32
      %c2_i32_9 = arith.constant 2 : i32
      %22 = arith.addi %21, %c2_i32_9 : i32
      %23 = arith.index_cast %22 : i32 to index
      %24 = memref.load %arg2[%23] : memref<12xf32, #tpu.memory_space<smem>>
      %c4_i32_10 = arith.constant 4 : i32
      %25 = arith.muli %c4_i32_10, %arg0 : i32
      %c3_i32 = arith.constant 3 : i32
      %26 = arith.addi %25, %c3_i32 : i32
      %27 = arith.index_cast %26 : i32 to index
      %28 = memref.load %arg2[%27] : memref<12xf32, #tpu.memory_space<smem>>
      %cst_11 = arith.constant 2.000000e+00 : f32
      %29 = arith.mulf %cst_11, %16 : f32
      %30 = arith.mulf %29, %16 : f32
      %cst_12 = arith.constant 2.000000e+00 : f32
      %31 = arith.mulf %cst_12, %20 : f32
      %32 = arith.mulf %31, %20 : f32
      %33 = arith.addf %30, %32 : f32
      %cst_13 = arith.constant 1.000000e+00 : f32
      %34 = arith.subf %33, %cst_13 : f32
      %cst_14 = arith.constant 2.000000e+00 : f32
      %35 = arith.mulf %cst_14, %20 : f32
      %36 = arith.mulf %35, %24 : f32
      %cst_15 = arith.constant 2.000000e+00 : f32
      %37 = arith.mulf %cst_15, %16 : f32
      %38 = arith.mulf %37, %28 : f32
      %39 = arith.subf %36, %38 : f32
      %cst_16 = arith.constant 2.000000e+00 : f32
      %40 = arith.mulf %cst_16, %20 : f32
      %41 = arith.mulf %40, %28 : f32
      %cst_17 = arith.constant 2.000000e+00 : f32
      %42 = arith.mulf %cst_17, %16 : f32
      %43 = arith.mulf %42, %24 : f32
      %44 = arith.addf %41, %43 : f32
      %cst_18 = arith.constant 2.000000e+00 : f32
      %45 = arith.mulf %cst_18, %20 : f32
      %46 = arith.mulf %45, %24 : f32
      %cst_19 = arith.constant 2.000000e+00 : f32
      %47 = arith.mulf %cst_19, %16 : f32
      %48 = arith.mulf %47, %28 : f32
      %49 = arith.addf %46, %48 : f32
      %cst_20 = arith.constant 2.000000e+00 : f32
      %50 = arith.mulf %cst_20, %16 : f32
      %51 = arith.mulf %50, %16 : f32
      %cst_21 = arith.constant 2.000000e+00 : f32
      %52 = arith.mulf %cst_21, %24 : f32
      %53 = arith.mulf %52, %24 : f32
      %54 = arith.addf %51, %53 : f32
      %cst_22 = arith.constant 1.000000e+00 : f32
      %55 = arith.subf %54, %cst_22 : f32
      %cst_23 = arith.constant 2.000000e+00 : f32
      %56 = arith.mulf %cst_23, %24 : f32
      %57 = arith.mulf %56, %28 : f32
      %cst_24 = arith.constant 2.000000e+00 : f32
      %58 = arith.mulf %cst_24, %16 : f32
      %59 = arith.mulf %58, %20 : f32
      %60 = arith.subf %57, %59 : f32
      %cst_25 = arith.constant 2.000000e+00 : f32
      %61 = arith.mulf %cst_25, %20 : f32
      %62 = arith.mulf %61, %28 : f32
      %cst_26 = arith.constant 2.000000e+00 : f32
      %63 = arith.mulf %cst_26, %16 : f32
      %64 = arith.mulf %63, %24 : f32
      %65 = arith.subf %62, %64 : f32
      %cst_27 = arith.constant 2.000000e+00 : f32
      %66 = arith.mulf %cst_27, %24 : f32
      %67 = arith.mulf %66, %28 : f32
      %cst_28 = arith.constant 2.000000e+00 : f32
      %68 = arith.mulf %cst_28, %16 : f32
      %69 = arith.mulf %68, %20 : f32
      %70 = arith.addf %67, %69 : f32
      %cst_29 = arith.constant 2.000000e+00 : f32
      %71 = arith.mulf %cst_29, %16 : f32
      %72 = arith.mulf %71, %16 : f32
      %cst_30 = arith.constant 2.000000e+00 : f32
      %73 = arith.mulf %cst_30, %28 : f32
      %74 = arith.mulf %73, %28 : f32
      %75 = arith.addf %72, %74 : f32
      %cst_31 = arith.constant 1.000000e+00 : f32
      %76 = arith.subf %75, %cst_31 : f32
      %c4_i32_32 = arith.constant 4 : i32
      %77 = arith.muli %c4_i32_32, %arg0 : i32
      %c0_i32_33 = arith.constant 0 : i32
      %78 = arith.addi %77, %c0_i32_33 : i32
      %79 = arith.index_cast %78 : i32 to index
      %80 = memref.load %arg3[%79] : memref<12xf32, #tpu.memory_space<smem>>
      %c4_i32_34 = arith.constant 4 : i32
      %81 = arith.muli %c4_i32_34, %arg0 : i32
      %c1_i32_35 = arith.constant 1 : i32
      %82 = arith.addi %81, %c1_i32_35 : i32
      %83 = arith.index_cast %82 : i32 to index
      %84 = memref.load %arg3[%83] : memref<12xf32, #tpu.memory_space<smem>>
      %c4_i32_36 = arith.constant 4 : i32
      %85 = arith.muli %c4_i32_36, %arg0 : i32
      %c2_i32_37 = arith.constant 2 : i32
      %86 = arith.addi %85, %c2_i32_37 : i32
      %87 = arith.index_cast %86 : i32 to index
      %88 = memref.load %arg3[%87] : memref<12xf32, #tpu.memory_space<smem>>
      %c4_i32_38 = arith.constant 4 : i32
      %89 = arith.muli %c4_i32_38, %arg0 : i32
      %c3_i32_39 = arith.constant 3 : i32
      %90 = arith.addi %89, %c3_i32_39 : i32
      %91 = arith.index_cast %90 : i32 to index
      %92 = memref.load %arg3[%91] : memref<12xf32, #tpu.memory_space<smem>>
      %cst_40 = arith.constant 2.000000e+00 : f32
      %93 = arith.mulf %cst_40, %80 : f32
      %94 = arith.mulf %93, %80 : f32
      %cst_41 = arith.constant 2.000000e+00 : f32
      %95 = arith.mulf %cst_41, %84 : f32
      %96 = arith.mulf %95, %84 : f32
      %97 = arith.addf %94, %96 : f32
      %cst_42 = arith.constant 1.000000e+00 : f32
      %98 = arith.subf %97, %cst_42 : f32
      %cst_43 = arith.constant 2.000000e+00 : f32
      %99 = arith.mulf %cst_43, %84 : f32
      %100 = arith.mulf %99, %88 : f32
      %cst_44 = arith.constant 2.000000e+00 : f32
      %101 = arith.mulf %cst_44, %80 : f32
      %102 = arith.mulf %101, %92 : f32
      %103 = arith.subf %100, %102 : f32
      %cst_45 = arith.constant 2.000000e+00 : f32
      %104 = arith.mulf %cst_45, %84 : f32
      %105 = arith.mulf %104, %92 : f32
      %cst_46 = arith.constant 2.000000e+00 : f32
      %106 = arith.mulf %cst_46, %80 : f32
      %107 = arith.mulf %106, %88 : f32
      %108 = arith.addf %105, %107 : f32
      %cst_47 = arith.constant 2.000000e+00 : f32
      %109 = arith.mulf %cst_47, %84 : f32
      %110 = arith.mulf %109, %88 : f32
      %cst_48 = arith.constant 2.000000e+00 : f32
      %111 = arith.mulf %cst_48, %80 : f32
      %112 = arith.mulf %111, %92 : f32
      %113 = arith.addf %110, %112 : f32
      %cst_49 = arith.constant 2.000000e+00 : f32
      %114 = arith.mulf %cst_49, %80 : f32
      %115 = arith.mulf %114, %80 : f32
      %cst_50 = arith.constant 2.000000e+00 : f32
      %116 = arith.mulf %cst_50, %88 : f32
      %117 = arith.mulf %116, %88 : f32
      %118 = arith.addf %115, %117 : f32
      %cst_51 = arith.constant 1.000000e+00 : f32
      %119 = arith.subf %118, %cst_51 : f32
      %cst_52 = arith.constant 2.000000e+00 : f32
      %120 = arith.mulf %cst_52, %88 : f32
      %121 = arith.mulf %120, %92 : f32
      %cst_53 = arith.constant 2.000000e+00 : f32
      %122 = arith.mulf %cst_53, %80 : f32
      %123 = arith.mulf %122, %84 : f32
      %124 = arith.subf %121, %123 : f32
      %cst_54 = arith.constant 2.000000e+00 : f32
      %125 = arith.mulf %cst_54, %84 : f32
      %126 = arith.mulf %125, %92 : f32
      %cst_55 = arith.constant 2.000000e+00 : f32
      %127 = arith.mulf %cst_55, %80 : f32
      %128 = arith.mulf %127, %88 : f32
      %129 = arith.subf %126, %128 : f32
      %cst_56 = arith.constant 2.000000e+00 : f32
      %130 = arith.mulf %cst_56, %88 : f32
      %131 = arith.mulf %130, %92 : f32
      %cst_57 = arith.constant 2.000000e+00 : f32
      %132 = arith.mulf %cst_57, %80 : f32
      %133 = arith.mulf %132, %84 : f32
      %134 = arith.addf %131, %133 : f32
      %cst_58 = arith.constant 2.000000e+00 : f32
      %135 = arith.mulf %cst_58, %80 : f32
      %136 = arith.mulf %135, %80 : f32
      %cst_59 = arith.constant 2.000000e+00 : f32
      %137 = arith.mulf %cst_59, %92 : f32
      %138 = arith.mulf %137, %92 : f32
      %139 = arith.addf %136, %138 : f32
      %cst_60 = arith.constant 1.000000e+00 : f32
      %140 = arith.subf %139, %cst_60 : f32
      %c0_61 = arith.constant 0 : index
      %c0_62 = arith.constant 0 : index
      %c0_63 = arith.constant 0 : index
      %141 = vector.load %arg5[%c0_61, %c0_62, %c0_63] : memref<1x3x256xf32, #tpu.memory_space<vmem>>, vector<1x1x256xf32>
      %142 = vector.shape_cast %141 : vector<1x1x256xf32> to vector<1x256xf32>
      %c0_64 = arith.constant 0 : index
      %c1 = arith.constant 1 : index
      %c0_65 = arith.constant 0 : index
      %143 = vector.load %arg5[%c0_64, %c1, %c0_65] : memref<1x3x256xf32, #tpu.memory_space<vmem>>, vector<1x1x256xf32>
      %144 = vector.shape_cast %143 : vector<1x1x256xf32> to vector<1x256xf32>
      %c0_66 = arith.constant 0 : index
      %c2 = arith.constant 2 : index
      %c0_67 = arith.constant 0 : index
      %145 = vector.load %arg5[%c0_66, %c2, %c0_67] : memref<1x3x256xf32, #tpu.memory_space<vmem>>, vector<1x1x256xf32>
      %146 = vector.shape_cast %145 : vector<1x1x256xf32> to vector<1x256xf32>
      %147 = vector.broadcast %34 : f32 to vector<1x256xf32>
      %148 = arith.mulf %147, %142 : vector<1x256xf32>
      %149 = vector.broadcast %39 : f32 to vector<1x256xf32>
      %150 = arith.mulf %149, %144 : vector<1x256xf32>
      %151 = arith.addf %148, %150 : vector<1x256xf32>
      %152 = vector.broadcast %44 : f32 to vector<1x256xf32>
      %153 = arith.mulf %152, %146 : vector<1x256xf32>
      %154 = arith.addf %151, %153 : vector<1x256xf32>
      %155 = vector.broadcast %49 : f32 to vector<1x256xf32>
      %156 = arith.mulf %155, %142 : vector<1x256xf32>
      %157 = vector.broadcast %55 : f32 to vector<1x256xf32>
      %158 = arith.mulf %157, %144 : vector<1x256xf32>
      %159 = arith.addf %156, %158 : vector<1x256xf32>
      %160 = vector.broadcast %60 : f32 to vector<1x256xf32>
      %161 = arith.mulf %160, %146 : vector<1x256xf32>
      %162 = arith.addf %159, %161 : vector<1x256xf32>
      %163 = vector.broadcast %65 : f32 to vector<1x256xf32>
      %164 = arith.mulf %163, %142 : vector<1x256xf32>
      %165 = vector.broadcast %70 : f32 to vector<1x256xf32>
      %166 = arith.mulf %165, %144 : vector<1x256xf32>
      %167 = arith.addf %164, %166 : vector<1x256xf32>
      %168 = vector.broadcast %76 : f32 to vector<1x256xf32>
      %169 = arith.mulf %168, %146 : vector<1x256xf32>
      %170 = arith.addf %167, %169 : vector<1x256xf32>
      %171 = vector.broadcast %98 : f32 to vector<1x256xf32>
      %172 = arith.mulf %171, %142 : vector<1x256xf32>
      %173 = vector.broadcast %103 : f32 to vector<1x256xf32>
      %174 = arith.mulf %173, %144 : vector<1x256xf32>
      %175 = arith.addf %172, %174 : vector<1x256xf32>
      %176 = vector.broadcast %108 : f32 to vector<1x256xf32>
      %177 = arith.mulf %176, %146 : vector<1x256xf32>
      %178 = arith.addf %175, %177 : vector<1x256xf32>
      %179 = vector.broadcast %113 : f32 to vector<1x256xf32>
      %180 = arith.mulf %179, %142 : vector<1x256xf32>
      %181 = vector.broadcast %119 : f32 to vector<1x256xf32>
      %182 = arith.mulf %181, %144 : vector<1x256xf32>
      %183 = arith.addf %180, %182 : vector<1x256xf32>
      %184 = vector.broadcast %124 : f32 to vector<1x256xf32>
      %185 = arith.mulf %184, %146 : vector<1x256xf32>
      %186 = arith.addf %183, %185 : vector<1x256xf32>
      %187 = vector.broadcast %129 : f32 to vector<1x256xf32>
      %188 = arith.mulf %187, %142 : vector<1x256xf32>
      %189 = vector.broadcast %134 : f32 to vector<1x256xf32>
      %190 = arith.mulf %189, %144 : vector<1x256xf32>
      %191 = arith.addf %188, %190 : vector<1x256xf32>
      %192 = vector.broadcast %140 : f32 to vector<1x256xf32>
      %193 = arith.mulf %192, %146 : vector<1x256xf32>
      %194 = arith.addf %191, %193 : vector<1x256xf32>
      %195 = tpu.iota {dimensions = array<i32: 1>} : vector<1x256xi32>
      %c200_i32 = arith.constant 200 : i32
      %196 = vector.broadcast %c200_i32 : i32 to vector<1x256xi32>
      %197 = arith.cmpi slt, %195, %196 : vector<1x256xi32>
      %cst_68 = arith.constant 0.000000e+00 : f32
      %198 = arith.cmpf ole, %3, %cst_68 : f32
      %199 = arith.extui %198 : i1 to i32
      %c0_i32_69 = arith.constant 0 : i32
      %200 = arith.cmpi ne, %199, %c0_i32_69 : i32
      scf.if %200 {
        %204 = arith.subf %154, %178 : vector<1x256xf32>
        %205 = arith.mulf %204, %204 : vector<1x256xf32>
        %206 = arith.subf %162, %186 : vector<1x256xf32>
        %207 = arith.mulf %206, %206 : vector<1x256xf32>
        %208 = arith.addf %205, %207 : vector<1x256xf32>
        %209 = arith.subf %170, %194 : vector<1x256xf32>
        %210 = arith.mulf %209, %209 : vector<1x256xf32>
        %211 = arith.addf %208, %210 : vector<1x256xf32>
        %cst_72 = arith.constant 5.000000e-01 : f32
        %212 = vector.broadcast %cst_72 : f32 to vector<1x256xf32>
        %213 = arith.mulf %212, %211 : vector<1x256xf32>
        %cst_73 = arith.constant 1.000000e-03 : f32
        %214 = vector.broadcast %cst_73 : f32 to vector<1x256xf32>
        %215 = arith.subf %213, %214 : vector<1x256xf32>
        %cst_74 = arith.constant 0.000000e+00 : f32
        %216 = vector.broadcast %cst_74 : f32 to vector<1x256xf32>
        %217 = arith.maximumf %215, %216 : vector<1x256xf32>
        %cst_75 = arith.constant 0.000000e+00 : f32
        %218 = vector.broadcast %cst_75 : f32 to vector<1x256xf32>
        %219 = arith.select %197, %217, %218 : vector<1x256xi1>, vector<1x256xf32>
        %220 = vector.shape_cast %219 : vector<1x256xf32> to vector<1x1x256xf32>
        %cst_76 = arith.constant dense<0.000000e+00> : vector<1xf32>
        %221 = vector.multi_reduction <add>, %220, %cst_76 [1, 2] : vector<1x1x256xf32> to vector<1xf32>
        %222 = vector.shape_cast %221 : vector<1xf32> to vector<1x1x1xf32>
        %223 = vector.extract %222[0, 0, 0] : f32 from vector<1x1x1xf32>
        %224 = vector.broadcast %223 : f32 to vector<1x1xf32>
        %cst_77 = arith.constant 0.00166666671 : f32
        %225 = vector.broadcast %cst_77 : f32 to vector<1x1xf32>
        %226 = arith.mulf %224, %225 : vector<1x1xf32>
        %227 = vector.shape_cast %226 : vector<1x1xf32> to vector<1x1x1xf32>
        %c0_78 = arith.constant 0 : index
        %c0_79 = arith.constant 0 : index
        %c0_80 = arith.constant 0 : index
        %228 = vector.load %arg6[%c0_78, %c0_79, %c0_80] : memref<1x1x1xf32, #tpu.memory_space<vmem>>, vector<1x1x1xf32>
        tpu.vector_store %arg6[%c0_78, %c0_79, %c0_80], %227 {strides = array<i32>} : memref<1x1x1xf32, #tpu.memory_space<vmem>>, vector<1x1x1xf32>,
      } else {
      }
      %cst_70 = arith.constant 0.000000e+00 : f32
      %201 = arith.cmpf ogt, %3, %cst_70 : f32
      %202 = arith.extui %201 : i1 to i32
      %c0_i32_71 = arith.constant 0 : i32
      %203 = arith.cmpi ne, %202, %c0_i32_71 : i32
      scf.if %203 {
        %204 = arith.mulf %178, %178 : vector<1x256xf32>
        %205 = arith.mulf %186, %186 : vector<1x256xf32>
        %206 = arith.addf %204, %205 : vector<1x256xf32>
        %207 = arith.mulf %194, %194 : vector<1x256xf32>
        %208 = arith.addf %206, %207 : vector<1x256xf32>
        %cst_72 = arith.constant 0.000000e+00 : f32
        %cst_73 = arith.constant 1.000000e+16 : f32
        %209 = vector.broadcast %cst_72 : f32 to vector<1x256xf32>
        %210 = vector.broadcast %cst_73 : f32 to vector<1x256xf32>
        %211 = arith.select %197, %209, %210 : vector<1x256xi1>, vector<1x256xf32>
        %212 = arith.addf %208, %211 : vector<1x256xf32>
        %213 = arith.mulf %154, %154 : vector<1x256xf32>
        %214 = arith.mulf %162, %162 : vector<1x256xf32>
        %215 = arith.addf %213, %214 : vector<1x256xf32>
        %216 = arith.mulf %170, %170 : vector<1x256xf32>
        %217 = arith.addf %215, %216 : vector<1x256xf32>
        %cst_74 = arith.constant 1.000000e+00 : f32
        %218 = vector.broadcast %cst_74 : f32 to vector<1x256xf32>
        %cst_75 = arith.constant 0.000000e+00 : f32
        %219 = vector.broadcast %cst_75 : f32 to vector<3x256xf32>
        %cst_76 = arith.constant -2.000000e+00 : f32
        %220 = vector.broadcast %cst_76 : f32 to vector<1x256xf32>
        %221 = arith.mulf %220, %178 : vector<1x256xf32>
        %c0_77 = arith.constant 0 : index
        %c0_78 = arith.constant 0 : index
        %222 = vector.load %arg7[%c0_77, %c0_78] : memref<8x256xf32, #tpu.memory_space<vmem>>, vector<1x256xf32>
        tpu.vector_store %arg7[%c0_77, %c0_78], %221 {strides = array<i32>} : memref<8x256xf32, #tpu.memory_space<vmem>>, vector<1x256xf32>,
        %cst_79 = arith.constant -2.000000e+00 : f32
        %223 = vector.broadcast %cst_79 : f32 to vector<1x256xf32>
        %224 = arith.mulf %223, %186 : vector<1x256xf32>
        %c1_80 = arith.constant 1 : index
        %c0_81 = arith.constant 0 : index
        %225 = vector.load %arg7[%c1_80, %c0_81] : memref<8x256xf32, #tpu.memory_space<vmem>>, vector<1x256xf32>
        tpu.vector_store %arg7[%c1_80, %c0_81], %224 {strides = array<i32>} : memref<8x256xf32, #tpu.memory_space<vmem>>, vector<1x256xf32>,
        %cst_82 = arith.constant -2.000000e+00 : f32
        %226 = vector.broadcast %cst_82 : f32 to vector<1x256xf32>
        %227 = arith.mulf %226, %194 : vector<1x256xf32>
        %c2_83 = arith.constant 2 : index
        %c0_84 = arith.constant 0 : index
        %228 = vector.load %arg7[%c2_83, %c0_84] : memref<8x256xf32, #tpu.memory_space<vmem>>, vector<1x256xf32>
        tpu.vector_store %arg7[%c2_83, %c0_84], %227 {strides = array<i32>} : memref<8x256xf32, #tpu.memory_space<vmem>>, vector<1x256xf32>,
        %c3 = arith.constant 3 : index
        %c0_85 = arith.constant 0 : index
        %229 = vector.load %arg7[%c3, %c0_85] : memref<8x256xf32, #tpu.memory_space<vmem>>, vector<1x256xf32>
        tpu.vector_store %arg7[%c3, %c0_85], %212 {strides = array<i32>} : memref<8x256xf32, #tpu.memory_space<vmem>>, vector<1x256xf32>,
        %c4 = arith.constant 4 : index
        %c0_86 = arith.constant 0 : index
        %230 = vector.load %arg7[%c4, %c0_86] : memref<8x256xf32, #tpu.memory_space<vmem>>, vector<1x256xf32>
        tpu.vector_store %arg7[%c4, %c0_86], %218 {strides = array<i32>} : memref<8x256xf32, #tpu.memory_space<vmem>>, vector<1x256xf32>,
        %c5 = arith.constant 5 : index
        %c0_87 = arith.constant 0 : index
        %231 = vector.load %arg7[%c5, %c0_87] : memref<8x256xf32, #tpu.memory_space<vmem>>, vector<3x256xf32>
        tpu.vector_store %arg7[%c5, %c0_87], %219 {strides = array<i32>} : memref<8x256xf32, #tpu.memory_space<vmem>>, vector<3x256xf32>,
        %c0_88 = arith.constant 0 : index
        %c0_89 = arith.constant 0 : index
        %232 = vector.load %arg8[%c0_88, %c0_89] : memref<8x256xf32, #tpu.memory_space<vmem>>, vector<1x256xf32>
        tpu.vector_store %arg8[%c0_88, %c0_89], %154 {strides = array<i32>} : memref<8x256xf32, #tpu.memory_space<vmem>>, vector<1x256xf32>,
        %c1_90 = arith.constant 1 : index
        %c0_91 = arith.constant 0 : index
        %233 = vector.load %arg8[%c1_90, %c0_91] : memref<8x256xf32, #tpu.memory_space<vmem>>, vector<1x256xf32>
        tpu.vector_store %arg8[%c1_90, %c0_91], %162 {strides = array<i32>} : memref<8x256xf32, #tpu.memory_space<vmem>>, vector<1x256xf32>,
        %c2_92 = arith.constant 2 : index
        %c0_93 = arith.constant 0 : index
        %234 = vector.load %arg8[%c2_92, %c0_93] : memref<8x256xf32, #tpu.memory_space<vmem>>, vector<1x256xf32>
        tpu.vector_store %arg8[%c2_92, %c0_93], %170 {strides = array<i32>} : memref<8x256xf32, #tpu.memory_space<vmem>>, vector<1x256xf32>,
        %c3_94 = arith.constant 3 : index
        %c0_95 = arith.constant 0 : index
        %235 = vector.load %arg8[%c3_94, %c0_95] : memref<8x256xf32, #tpu.memory_space<vmem>>, vector<1x256xf32>
        tpu.vector_store %arg8[%c3_94, %c0_95], %218 {strides = array<i32>} : memref<8x256xf32, #tpu.memory_space<vmem>>, vector<1x256xf32>,
        %c4_96 = arith.constant 4 : index
        %c0_97 = arith.constant 0 : index
        %236 = vector.load %arg8[%c4_96, %c0_97] : memref<8x256xf32, #tpu.memory_space<vmem>>, vector<1x256xf32>
        tpu.vector_store %arg8[%c4_96, %c0_97], %217 {strides = array<i32>} : memref<8x256xf32, #tpu.memory_space<vmem>>, vector<1x256xf32>,
        %c5_98 = arith.constant 5 : index
        %c0_99 = arith.constant 0 : index
        %237 = vector.load %arg8[%c5_98, %c0_99] : memref<8x256xf32, #tpu.memory_space<vmem>>, vector<3x256xf32>
        tpu.vector_store %arg8[%c5_98, %c0_99], %219 {strides = array<i32>} : memref<8x256xf32, #tpu.memory_space<vmem>>, vector<3x256xf32>,
        %cst_100 = arith.constant 0.000000e+00 : f32
        %238 = vector.broadcast %cst_100 : f32 to vector<1x1xf32>
        %c0_i32_101 = arith.constant 0 : i32
        %c256_i32 = arith.constant 256 : i32
        %239 = arith.muli %c0_i32_101, %c256_i32 : i32
        %240 = tpu.assume_multiple %239, 256 : i32
        %c0_102 = arith.constant 0 : index
        %241 = arith.index_cast %240 : i32 to index
        %242 = vector.load %arg8[%c0_102, %241] : memref<8x256xf32, #tpu.memory_space<vmem>>, vector<8x256xf32>
        %cst_103 = arith.constant 1.000000e+16 : f32
        %243 = vector.broadcast %cst_103 : f32 to vector<1x256xf32>
        %c0_i32_104 = arith.constant 0 : i32
        %c256_i32_105 = arith.constant 256 : i32
        %244 = arith.muli %c0_i32_104, %c256_i32_105 : i32
        %245 = tpu.assume_multiple %244, 256 : i32
        %c0_106 = arith.constant 0 : index
        %246 = arith.index_cast %245 : i32 to index
        %247 = vector.load %arg7[%c0_106, %246] : memref<8x256xf32, #tpu.memory_space<vmem>>, vector<8x256xf32>
        %cst_107 = arith.constant dense<0.000000e+00> : vector<256x256xf32>
        %248 = tpu.matmul %247, %242, %cst_107 {dimension_numbers = #tpu.dot_dimension_numbers<[0], [0], [1], [1], [0, 1, 1, 1], [], []>} : vector<8x256xf32>, vector<8x256xf32>, vector<256x256xf32> -> vector<256x256xf32>
        %cst_108 = arith.constant dense<0x7F800000> : vector<256xf32>
        %249 = vector.multi_reduction <minimumf>, %248, %cst_108 [0] : vector<256x256xf32> to vector<256xf32>
        %250 = vector.shape_cast %249 : vector<256xf32> to vector<1x256xf32>
        %251 = arith.minimumf %243, %250 : vector<1x256xf32>
        %c1_i32_109 = arith.constant 1 : i32
        %252 = tpu.iota {dimensions = array<i32: 1>} : vector<1x256xi32>
        %253 = vector.broadcast %240 : i32 to vector<1x256xi32>
        %254 = arith.addi %252, %253 : vector<1x256xi32>
        %c200_i32_110 = arith.constant 200 : i32
        %255 = vector.broadcast %c200_i32_110 : i32 to vector<1x256xi32>
        %256 = arith.cmpi slt, %254, %255 : vector<1x256xi32>
        %cst_111 = arith.constant 5.000000e-01 : f32
        %257 = vector.broadcast %cst_111 : f32 to vector<1x256xf32>
        %258 = arith.mulf %257, %251 : vector<1x256xf32>
        %cst_112 = arith.constant 1.000000e-03 : f32
        %259 = vector.broadcast %cst_112 : f32 to vector<1x256xf32>
        %260 = arith.subf %258, %259 : vector<1x256xf32>
        %cst_113 = arith.constant 0.000000e+00 : f32
        %261 = vector.broadcast %cst_113 : f32 to vector<1x256xf32>
        %262 = arith.maximumf %260, %261 : vector<1x256xf32>
        %cst_114 = arith.constant 0.000000e+00 : f32
        %263 = vector.broadcast %cst_114 : f32 to vector<1x256xf32>
        %264 = arith.select %256, %262, %263 : vector<1x256xi1>, vector<1x256xf32>
        %265 = vector.shape_cast %264 : vector<1x256xf32> to vector<1x1x256xf32>
        %cst_115 = arith.constant dense<0.000000e+00> : vector<1xf32>
        %266 = vector.multi_reduction <add>, %265, %cst_115 [1, 2] : vector<1x1x256xf32> to vector<1xf32>
        %267 = vector.shape_cast %266 : vector<1xf32> to vector<1x1x1xf32>
        %268 = vector.extract %267[0, 0, 0] : f32 from vector<1x1x1xf32>
        %269 = vector.broadcast %268 : f32 to vector<1x1xf32>
        %270 = arith.addf %238, %269 : vector<1x1xf32>
        %c1_i32_116 = arith.constant 1 : i32
        %cst_117 = arith.constant 0.00166666671 : f32
        %271 = vector.broadcast %cst_117 : f32 to vector<1x1xf32>
        %272 = arith.mulf %270, %271 : vector<1x1xf32>
        %273 = vector.shape_cast %272 : vector<1x1xf32> to vector<1x1x1xf32>
        %c0_118 = arith.constant 0 : index
        %c0_119 = arith.constant 0 : index
        %c0_120 = arith.constant 0 : index
        %274 = vector.load %arg6[%c0_118, %c0_119, %c0_120] : memref<1x1x1xf32, #tpu.memory_space<vmem>>, vector<1x1x1xf32>
        tpu.vector_store %arg6[%c0_118, %c0_119, %c0_120], %273 {strides = array<i32>} : memref<1x1x1xf32, #tpu.memory_space<vmem>>, vector<1x1x1xf32>,
      } else {
      }
    } else {
    }
    return
  }
  func.func @transform_0(%arg0: i32, %arg1: memref<3xi32, #tpu.memory_space<smem>>) -> i32 {
    %c0_i32 = arith.constant 0 : i32
    %c0_i32_0 = arith.constant 0 : i32
    return %c0_i32 : i32
  }
  func.func @transform_1(%arg0: i32, %arg1: memref<3xi32, #tpu.memory_space<smem>>) -> i32 {
    %c0_i32 = arith.constant 0 : i32
    %c0_i32_0 = arith.constant 0 : i32
    return %c0_i32 : i32
  }
  func.func @transform_2(%arg0: i32, %arg1: memref<3xi32, #tpu.memory_space<smem>>) -> i32 {
    %c0_i32 = arith.constant 0 : i32
    %c0_i32_0 = arith.constant 0 : i32
    return %c0_i32 : i32
  }
  func.func @transform_3(%arg0: i32, %arg1: memref<3xi32, #tpu.memory_space<smem>>) -> (i32, i32, i32) {
    %0 = arith.index_cast %arg0 : i32 to index
    %1 = memref.load %arg1[%0] : memref<3xi32, #tpu.memory_space<smem>>
    %c0_i32 = arith.constant 0 : i32
    %c0_i32_0 = arith.constant 0 : i32
    %c0_i32_1 = arith.constant 0 : i32
    return %1, %c0_i32, %c0_i32_0 : i32, i32, i32
  }
  func.func @transform_4(%arg0: i32, %arg1: memref<3xi32, #tpu.memory_space<smem>>) -> (i32, i32, i32) {
    %c0_i32 = arith.constant 0 : i32
    %c0_i32_0 = arith.constant 0 : i32
    %c0_i32_1 = arith.constant 0 : i32
    return %arg0, %c0_i32, %c0_i32_0 : i32, i32, i32
  }
}

</mosaic_0001>

<llo_original>
// kernel: tpu_custom_call.1
$region0: #{tpu_custom_call.1}
  #allocation0 [shape = 'u32[]', space=smem, size = 0x4, offset = 0x4, fixed_abs, tag = 'smem constant byte address 0x4 - core index']
  #allocation1 [shape = 'u32[144,128]{1,0:T(1,128)}', space=vmem, size = 0x12000, scoped, tag = 'internal scratch']
  #allocation2 [shape = 'f32[8,256]{1,0:T(8,128)}', space=vmem, size = 0x2000, scoped, tag = 'scratch operand']
  #allocation3 [shape = 'f32[8,256]{1,0:T(8,128)}', space=vmem, size = 0x2000, scoped, tag = 'scratch operand']
  #allocation4 [shape = 's32[1]{0}', space=sflag, size = 0x4, scoped, tag = 'scoped memory for tpu_custom_call.1']
  #allocation5 [shape = 'u8[512]{0}', space=smem, size = 0x200, scoped, tag = 'prefetched SMEM operand 0']
  %s0 = inlined_call_operand.vmem [shape: s32[3], index: 0, kind: input, shape index: {}]
  %s1 = inlined_call_operand.vmem [shape: f32[12], index: 1, kind: input, shape index: {}]
  %s2 = inlined_call_operand.vmem [shape: f32[12], index: 2, kind: input, shape index: {}]
  %s3 = inlined_call_operand.vmem [shape: f32[6], index: 3, kind: input, shape index: {}]
  %s4 = inlined_call_operand.vmem [shape: f32[4,3,256], index: 4, kind: input, shape index: {}]
  %s5 = inlined_call_operand.vmem [shape: f32[3,1,1], index: 5, kind: output, shape index: {}]
  %s6 = sld [smem:[#allocation0]]
  $region73: #{tpu_custom_call.1} parent=0
    _
  %s8 = ssub.s32 1, %s6
  %s9 = scalar_select 0, %s8, %s6
  %s10 = sshll.u32 %s0, 4
  %s11 = int_to_ptr.vmem [resolvable:$true] %s10
  %13 = dma.vmem_to_smem %s11, 16, [#allocation5], [#allocation4]
  %14 = dma.done [#allocation4], 16
  %15 = sfence
  $region1: #{tpu_custom_call.1} parent=0
    #allocation6 [shape = 'u8[512]{0}', space=smem, size = 0x200, scoped, tag = 'input window, operand 1, single buffered']
    #allocation7 [shape = 's32[2]{0}', space=sflag, size = 0x8, scoped, tag = 'scoped memory for tpu_custom_call.1']
    #allocation8 [shape = 'u8[512]{0}', space=smem, size = 0x200, scoped, tag = 'input window, operand 2, single buffered']
    #allocation9 [shape = 's32[1]{0}', space=sflag, size = 0x4, scoped, tag = 'scoped memory for tpu_custom_call.1']
    #allocation10 [shape = 'u8[512]{0}', space=smem, size = 0x200, scoped, tag = 'input window, operand 3, single buffered']
    %16 = vsyncpa [#allocation7], 0
    %17 = vsyncpa [#allocation9], 0
    loop: start=0, step=1, limit=5
    $region2: #{tpu_custom_call.1} parent=1 // loop_pre_header
      _
    $region3: #{tpu_custom_call.1} parent=1 // loop_header
      %s19 = sphi 0, %s23
      %p20 = scmp.ge.s32.totalorder %s19, 5
      %s27 = sphi 0, %s27
      %s29 = sphi 0, %s27
      %s30 = sphi 0, %s29
      %s44 = sphi 0, %s30
      %s48 = sphi 0, %s48
      %s50 = sphi 0, %s48
      %s51 = sphi 0, %s50
      %s65 = sphi 0, %s51
      %s69 = sphi 0, %s69
      %s71 = sphi 0, %s69
      %s72 = sphi 0, %s71
      %s86 = sphi 0, %s72
      %s94 = sphi 0, %s96
      %s97 = sphi 0, %s94
      %s98 = sphi 0, %s97
      %s114 = sphi 0, %s98
      %s120 = sphi 0, %s122
      %s123 = sphi 0, %s120
      %s124 = sphi 0, %s123
      %s140 = sphi 0, %s124
    $region4: #{tpu_custom_call.1} parent=1 // loop_header_branch
      %22 = sbr.rel (%p20) target = $region8
    $region5: #{tpu_custom_call.1} parent=1 // loop_body
      %s24 = ssub.s32 %s19, 1
      %s25 = ssub.s32 %s19, 2
      %s26 = sadd.s32 %s19, 1
      %s28 = sadd.s32 %s27, 1
      %p31 = scmp.eq.s32.totalorder %s19, 2
      %p32 = scmp.ne.s32.totalorder %s27, %s29
      %p33 = scmp.eq.s32.totalorder %s19, 0
      %p34 = por %p32, %p33
      %p35 = scmp.ne.s32.totalorder %s27, %s29
      %p36 = scmp.eq.s32.totalorder %s24, 2
      %p37 = por %p35, %p36
      %p38 = scmp.ne.s32.totalorder %s29, %s30
      %p39 = scmp.eq.s32.totalorder %s24, 0
      %p40 = por %p38, %p39
      %p41 = scmp.ne.s32.totalorder %s29, %s30
      %p42 = scmp.eq.s32.totalorder %s25, 2
      %p43 = por %p41, %p42
      %p45 = scmp.ne.s32.totalorder %s30, %s44
      %p46 = scmp.eq.s32.totalorder %s25, 0
      %p47 = por %p45, %p46
      %s49 = sadd.s32 %s48, 1
      %p52 = scmp.eq.s32.totalorder %s19, 2
      %p53 = scmp.ne.s32.totalorder %s48, %s50
      %p54 = scmp.eq.s32.totalorder %s19, 0
      %p55 = por %p53, %p54
      %p56 = scmp.ne.s32.totalorder %s48, %s50
      %p57 = scmp.eq.s32.totalorder %s24, 2
      %p58 = por %p56, %p57
      %p59 = scmp.ne.s32.totalorder %s50, %s51
      %p60 = scmp.eq.s32.totalorder %s24, 0
      %p61 = por %p59, %p60
      %p62 = scmp.ne.s32.totalorder %s50, %s51
      %p63 = scmp.eq.s32.totalorder %s25, 2
      %p64 = por %p62, %p63
      %p66 = scmp.ne.s32.totalorder %s51, %s65
      %p67 = scmp.eq.s32.totalorder %s25, 0
      %p68 = por %p66, %p67
      %s70 = sadd.s32 %s69, 1
      %p73 = scmp.eq.s32.totalorder %s19, 2
      %p74 = scmp.ne.s32.totalorder %s69, %s71
      %p75 = scmp.eq.s32.totalorder %s19, 0
      %p76 = por %p74, %p75
      %p77 = scmp.ne.s32.totalorder %s69, %s71
      %p78 = scmp.eq.s32.totalorder %s24, 2
      %p79 = por %p77, %p78
      %p80 = scmp.ne.s32.totalorder %s71, %s72
      %p81 = scmp.eq.s32.totalorder %s24, 0
      %p82 = por %p80, %p81
      %p83 = scmp.ne.s32.totalorder %s71, %s72
      %p84 = scmp.eq.s32.totalorder %s25, 2
      %p85 = por %p83, %p84
      %p87 = scmp.ne.s32.totalorder %s72, %s86
      %p88 = scmp.eq.s32.totalorder %s25, 0
      %p89 = por %p87, %p88
      %s90 = sld [smem:[#allocation5 + %s19]]
      %s91 = sld [smem:[#allocation5 + %s26]]
      %s92 = ssub.s32 %s90, %s91
      %p93 = scmp.eq.s32.totalorder %s92, 0
      %s95 = sadd.s32 %s94, 1
      %s96 = scalar_select %p93, %s94, %s95
      %p99 = pneg %p93
      %p100 = scmp.eq.s32.totalorder %s19, 2
      %p101 = por %p99, %p100
      %p102 = scmp.ne.s32.totalorder %s94, %s97
      %p103 = scmp.eq.s32.totalorder %s19, 0
      %p104 = por %p102, %p103
      %p105 = scmp.ne.s32.totalorder %s94, %s97
      %p106 = scmp.eq.s32.totalorder %s24, 2
      %p107 = por %p105, %p106
      %p108 = scmp.ne.s32.totalorder %s97, %s98
      %p109 = scmp.eq.s32.totalorder %s24, 0
      %p110 = por %p108, %p109
      %p111 = scmp.ne.s32.totalorder %s97, %s98
      %p112 = scmp.eq.s32.totalorder %s25, 2
      %p113 = por %p111, %p112
      %p115 = scmp.ne.s32.totalorder %s98, %s114
      %p116 = scmp.eq.s32.totalorder %s25, 0
      %p117 = por %p115, %p116
      %s118 = ssub.s32 %s19, %s26
      %p119 = scmp.eq.s32.totalorder %s118, 0
      %s121 = sadd.s32 %s120, 1
      %s122 = scalar_select %p119, %s120, %s121
      %p125 = pneg %p119
      %p126 = scmp.eq.s32.totalorder %s19, 2
      %p127 = por %p125, %p126
      %p128 = scmp.ne.s32.totalorder %s120, %s123
      %p129 = scmp.eq.s32.totalorder %s19, 0
      %p130 = por %p128, %p129
      %p131 = scmp.ne.s32.totalorder %s120, %s123
      %p132 = scmp.eq.s32.totalorder %s24, 2
      %p133 = por %p131, %p132
      %p134 = scmp.ne.s32.totalorder %s123, %s124
      %p135 = scmp.eq.s32.totalorder %s24, 0
      %p136 = por %p134, %p135
      %p137 = scmp.ne.s32.totalorder %s123, %s124
      %p138 = scmp.eq.s32.totalorder %s25, 2
      %p139 = por %p137, %p138
      %p141 = scmp.ne.s32.totalorder %s124, %s140
      %p142 = scmp.eq.s32.totalorder %s25, 0
      %p143 = por %p141, %p142
      %p144 = scmp.le.s32.totalorder 1, %s19
      %p145 = scmp.lt.s32.totalorder %s19, 4
      %p146 = pnand %p144, %p145
      %p147 = pneg %p146
      // Predicated region
      $region9: #{tpu_custom_call.1} parent=5 // pred_check
        _
      $region10: #{tpu_custom_call.1} parent=5 // pred_check_branch
        %149 = sbr.rel (%p146) target = $region12
      $region11: #{tpu_custom_call.1} parent=5 // pred_region
        %s150 = ssub.s32 %s19, 1
        // Predicated region
        $region13: #{tpu_custom_call.1} parent=11 // pred_check
          %p151 = pneg %p40
        $region14: #{tpu_custom_call.1} parent=11 // pred_check_branch
          %153 = sbr.rel (%p151) target = $region16
        $region15: #{tpu_custom_call.1} parent=11 // pred_region
          %s155 = ssub.s32 16, 16
          %156 = vsyncadd [#allocation7], %s155
          %s158 = sshll.u32 %s1, 4
          %s159 = int_to_ptr.vmem [resolvable:$true] %s158
          %161 = dma.vmem_to_smem %s159, 16, [#allocation6], [#allocation7]
        $region16: #{tpu_custom_call.1} parent=11 // pred_fallthru
          _
        // Predicated region
        $region17: #{tpu_custom_call.1} parent=11 // pred_check
          %p162 = pneg %p61
        $region18: #{tpu_custom_call.1} parent=11 // pred_check_branch
          %164 = sbr.rel (%p162) target = $region20
        $region19: #{tpu_custom_call.1} parent=11 // pred_region
          %s166 = ssub.s32 16, 16
          %167 = vsyncadd [#allocation9], %s166
          %s169 = sshll.u32 %s2, 4
          %s170 = int_to_ptr.vmem [resolvable:$true] %s169
          %172 = dma.vmem_to_smem %s170, 16, [#allocation8], [#allocation9]
        $region20: #{tpu_custom_call.1} parent=11 // pred_fallthru
          _
        // Predicated region
        $region21: #{tpu_custom_call.1} parent=11 // pred_check
          %p173 = pneg %p82
        $region22: #{tpu_custom_call.1} parent=11 // pred_check_branch
          %175 = sbr.rel (%p173) target = $region24
        $region23: #{tpu_custom_call.1} parent=11 // pred_region
          %s177 = ssub.s32 16, 16
          %178 = vsyncadd [#allocation9], %s177
          %s180 = sshll.u32 %s3, 4
          %s181 = int_to_ptr.vmem [resolvable:$true] %s180
          %183 = dma.vmem_to_smem %s181, 16, [#allocation10], [#allocation9]
        $region24: #{tpu_custom_call.1} parent=11 // pred_fallthru
          _
      $region12: #{tpu_custom_call.1} parent=5 // pred_fallthru
        _
      %p184 = scmp.lt.s32.totalorder %s19, 3
      // Predicated region
      $region25: #{tpu_custom_call.1} parent=5 // pred_check
        %p185 = pneg %p184
      $region26: #{tpu_custom_call.1} parent=5 // pred_check_branch
        %187 = sbr.rel (%p185) target = $region28
      $region27: #{tpu_custom_call.1} parent=5 // pred_region
        // Predicated region
        $region29: #{tpu_custom_call.1} parent=27 // pred_check
          %p188 = pneg %p104
        $region30: #{tpu_custom_call.1} parent=27 // pred_check_branch
          %190 = sbr.rel (%p188) target = $region32
        $region31: #{tpu_custom_call.1} parent=27 // pred_region
          %s191 = sld [smem:[#allocation5 + %s19]]
          %p192 = scmp.lt.s32.totalorder %s191, 3
          %s193 = scalar_select %p192, %s191, 3
          %s194 = smul.addr %s193, 2
          %s195 = smul.addr %s194, 4
          %s196 = scalar_lea.vmem %s4, %s195
          %s197 = sld [smem:[#allocation5 + %s19]]
        $region32: #{tpu_custom_call.1} parent=27 // pred_fallthru
          _
      $region28: #{tpu_custom_call.1} parent=5 // pred_fallthru
        _
      %p198 = scmp.le.s32.totalorder 1, %s19
      %p199 = scmp.lt.s32.totalorder %s19, 4
      %p200 = pnand %p198, %p199
      %p201 = pneg %p200
      // Predicated region
      $region33: #{tpu_custom_call.1} parent=5 // pred_check
        _
      $region34: #{tpu_custom_call.1} parent=5 // pred_check_branch
        %203 = sbr.rel (%p200) target = $region36
      $region35: #{tpu_custom_call.1} parent=5 // pred_region
        %s204 = ssub.s32 %s19, 1
        // Predicated region
        $region37: #{tpu_custom_call.1} parent=35 // pred_check
          %p205 = pneg %p40
        $region38: #{tpu_custom_call.1} parent=35 // pred_check_branch
          %207 = sbr.rel (%p205) target = $region40
        $region39: #{tpu_custom_call.1} parent=35 // pred_region
          %208 = dma.done [#allocation7], 16
        $region40: #{tpu_custom_call.1} parent=35 // pred_fallthru
          _
        // Predicated region
        $region41: #{tpu_custom_call.1} parent=35 // pred_check
          %p209 = pneg %p61
        $region42: #{tpu_custom_call.1} parent=35 // pred_check_branch
          %211 = sbr.rel (%p209) target = $region44
        $region43: #{tpu_custom_call.1} parent=35 // pred_region
          %212 = dma.done [#allocation9], 16
        $region44: #{tpu_custom_call.1} parent=35 // pred_fallthru
          _
        // Predicated region
        $region45: #{tpu_custom_call.1} parent=35 // pred_check
          %p213 = pneg %p82
        $region46: #{tpu_custom_call.1} parent=35 // pred_check_branch
          %215 = sbr.rel (%p213) target = $region48
        $region47: #{tpu_custom_call.1} parent=35 // pred_region
          %216 = dma.done [#allocation9], 16
        $region48: #{tpu_custom_call.1} parent=35 // pred_fallthru
          _
        %217 = sfence
        %p218 = pneg %p40
        %p219 = pneg %p37
        %p220 = pneg %p61
        %p221 = pneg %p58
        %p222 = pneg %p82
        %p223 = pneg %p79
        %s224 = sld [smem:[#allocation5 + %s24]]
        %p225 = scmp.lt.s32.totalorder %s224, 3
        %s226 = scalar_select %p225, %s224, 3
        %s227 = smul.addr %s226, 2
        %s228 = smul.addr %s227, 4
        %s229 = scalar_lea.vmem %s4, %s228
        %p230 = pneg %p110
        %p231 = pneg %p107
        %p232 = pneg %p136
        %p233 = pneg %p133
        %p234 = scmp.lt.s32.totalorder %s24, 2
        %s235 = scalar_select %p234, %s24, 2
        %s236 = scalar_lea.vmem %s5, %s235
        %s237 = sld [smem:[#allocation5 + %s24]]
        %p238 = scmp.lt.s32.totalorder %s237, 3
        %s239 = scalar_select %p238, %s237, 3
        %s240 = smul.addr %s239, 2
        %s241 = smul.addr %s240, 4
        %s242 = scalar_lea.vmem %s4, %s241
        %s243 = sld [smem:[#allocation5 + %s24]]
        %p244 = scmp.lt.s32.totalorder %s24, 2
        %s245 = scalar_select %p244, %s24, 2
        %s246 = scalar_lea.vmem %s5, %s245
        %s247 = smul.u32 %s24, 2
        %s248 = sld [smem:[#allocation10 + %s247]]
        %s249 = sadd.s32 %s247, 1
        %s250 = sld [smem:[#allocation10 + %s249]]
        %vm251 = vcmask 0
        %252 = vst.msk [vmem:[%s246] sm:$0x1] %vm251, 0.0
        %p253 = scmp.gt.f32.partialorder %s250, 0.0
        // Predicated region
        $region49: #{tpu_custom_call.1} parent=35 // pred_check
          %p254 = pneg %p253
        $region50: #{tpu_custom_call.1} parent=35 // pred_check_branch
          %256 = sbr.rel (%p254) target = $region52
        $region51: #{tpu_custom_call.1} parent=35 // pred_region
          %s257 = smul.u32 %s24, 4
          %s258 = sld [smem:[#allocation6 + %s257]]
          %s259 = sadd.s32 %s257, 1
          %s260 = sld [smem:[#allocation6 + %s259]]
          %s261 = sadd.s32 %s257, 2
          %s262 = sld [smem:[#allocation6 + %s261]]
          %s263 = sadd.s32 %s257, 3
          %s264 = sld [smem:[#allocation6 + %s263]]
          %s265 = smul.f32 %s258, 2.0
          %s266 = smul.f32 %s265, %s258
          %s267 = smul.f32 %s260, 2.0
          %s268 = smul.f32 %s267, %s260
          %s269 = sadd.f32 %s266, %s268
          %s270 = ssub.f32 %s269, 1.0
          %s271 = smul.f32 %s267, %s262
          %s272 = smul.f32 %s265, %s264
          %s273 = ssub.f32 %s271, %s272
          %s274 = smul.f32 %s267, %s264
          %s275 = smul.f32 %s265, %s262
          %s276 = sadd.f32 %s274, %s275
          %s277 = sadd.f32 %s271, %s272
          %s278 = smul.f32 %s262, 2.0
          %s279 = smul.f32 %s278, %s262
          %s280 = sadd.f32 %s266, %s279
          %s281 = ssub.f32 %s280, 1.0
          %s282 = smul.f32 %s278, %s264
          %s283 = smul.f32 %s265, %s260
          %s284 = ssub.f32 %s282, %s283
          %s285 = ssub.f32 %s274, %s275
          %s286 = sadd.f32 %s282, %s283
          %s287 = smul.f32 %s264, 2.0
          %s288 = smul.f32 %s287, %s264
          %s289 = sadd.f32 %s266, %s288
          %s290 = ssub.f32 %s289, 1.0
          %s291 = sld [smem:[#allocation8 + %s257]]
          %s292 = sld [smem:[#allocation8 + %s259]]
          %s293 = sld [smem:[#allocation8 + %s261]]
          %s294 = sld [smem:[#allocation8 + %s263]]
          %s295 = smul.f32 %s291, 2.0
          %s296 = smul.f32 %s295, %s291
          %s297 = smul.f32 %s292, 2.0
          %s298 = smul.f32 %s297, %s292
          %s299 = sadd.f32 %s296, %s298
          %s300 = ssub.f32 %s299, 1.0
          %s301 = smul.f32 %s297, %s293
          %s302 = smul.f32 %s295, %s294
          %s303 = ssub.f32 %s301, %s302
          %s304 = smul.f32 %s297, %s294
          %s305 = smul.f32 %s295, %s293
          %s306 = sadd.f32 %s304, %s305
          %s307 = sadd.f32 %s301, %s302
          %s308 = smul.f32 %s293, 2.0
          %s309 = smul.f32 %s308, %s293
          %s310 = sadd.f32 %s296, %s309
          %s311 = ssub.f32 %s310, 1.0
          %s312 = smul.f32 %s308, %s294
          %s313 = smul.f32 %s295, %s292
          %s314 = ssub.f32 %s312, %s313
          %s315 = ssub.f32 %s304, %s305
          %s316 = sadd.f32 %s312, %s313
          %s317 = smul.f32 %s294, 2.0
          %s318 = smul.f32 %s317, %s294
          %s319 = sadd.f32 %s296, %s318
          %s320 = ssub.f32 %s319, 1.0
          %v321 = vld [vmem:[%s242] ss:$4 sm:$0x3]
          %s322 = scalar_lea.vmem %s242, 1
          %v323 = vld [vmem:[%s322] ss:$4 sm:$0x3]
          %s324 = scalar_lea.vmem %s242, 2
          %v325 = vld [vmem:[%s324] ss:$4 sm:$0x3]
          %v326 = vstv %s270
          %v327 = vmul.f32 %v326, %v321
          %v328 = vstv %s273
          %v329 = vmul.f32 %v328, %v323
          %v330 = vadd.f32 %v327, %v329
          %v331 = vstv %s276
          %v332 = vmul.f32 %v331, %v325
          %v333 = vadd.f32 %v330, %v332
          %v334 = vstv %s277
          %v335 = vmul.f32 %v334, %v321
          %v336 = vstv %s281
          %v337 = vmul.f32 %v336, %v323
          %v338 = vadd.f32 %v335, %v337
          %v339 = vstv %s284
          %v340 = vmul.f32 %v339, %v325
          %v341 = vadd.f32 %v338, %v340
          %v342 = vstv %s285
          %v343 = vmul.f32 %v342, %v321
          %v344 = vstv %s286
          %v345 = vmul.f32 %v344, %v323
          %v346 = vadd.f32 %v343, %v345
          %v347 = vstv %s290
          %v348 = vmul.f32 %v347, %v325
          %v349 = vadd.f32 %v346, %v348
          %v350 = vstv %s300
          %v351 = vmul.f32 %v350, %v321
          %v352 = vstv %s303
          %v353 = vmul.f32 %v352, %v323
          %v354 = vadd.f32 %v351, %v353
          %v355 = vstv %s306
          %v356 = vmul.f32 %v355, %v325
          %v357 = vadd.f32 %v354, %v356
          %v358 = vstv %s307
          %v359 = vmul.f32 %v358, %v321
          %v360 = vstv %s311
          %v361 = vmul.f32 %v360, %v323
          %v362 = vadd.f32 %v359, %v361
          %v363 = vstv %s314
          %v364 = vmul.f32 %v363, %v325
          %v365 = vadd.f32 %v362, %v364
          %v366 = vstv %s315
          %v367 = vmul.f32 %v366, %v321
          %v368 = vstv %s316
          %v369 = vmul.f32 %v368, %v323
          %v370 = vadd.f32 %v367, %v369
          %v371 = vstv %s320
          %v372 = vmul.f32 %v371, %v325
          %v373 = vadd.f32 %v370, %v372
          %v374 = vlaneseq
          %v375 = vand.u32 %v374, 127
          %v376 = vadd.s32 %v375, 128
          %vm377 = vcmp.lt.s32.totalorder %v375, 200
          %vm378 = vcmp.lt.s32.totalorder %v376, 200
          %p379 = scmp.le.f32.partialorder %s248, 0.0
          // Predicated region
          $region53: #{tpu_custom_call.1} parent=51 // pred_check
            %p380 = pneg %p379
          $region54: #{tpu_custom_call.1} parent=51 // pred_check_branch
            %382 = sbr.rel (%p380) target = $region56
          $region55: #{tpu_custom_call.1} parent=51 // pred_region
            %v383 = vsub.f32 %v333, %v357
            %v384 = vmul.f32 %v383, %v383
            %v385 = vsub.f32 %v341, %v365
            %v386 = vmul.f32 %v385, %v385
            %v387 = vadd.f32 %v384, %v386
            %v388 = vsub.f32 %v349, %v373
            %v389 = vmul.f32 %v388, %v388
            %v390 = vadd.f32 %v387, %v389
            %v391 = vmul.f32 %v390, 0.5
            %v392 = vsub.f32 %v391, 0.001
            %v393 = vmax.f32 %v392, 0.0
            %v395 = vlaneseq
            %v396 = vshrl.u32 %v395, 7
            %v397 = vsub.s32 0, %v396
            %v398 = vrot.slane %v393, %v397
            %v399 = vlaneseq
            %v400 = vshrl.u32 %v399, 7
            %v401 = vsub.s32 1, %v400
            %v402 = vrot.slane %v393, %v401
            %v405 = vsel %vm377, %v398, 0.0
            %v406 = vsel %vm378, %v402, 0.0
            %vm407 = vcmask 1040384
            %v408 = vsel %vm407, %v405, 0.0
            %v409 = vsel %vm407, %v406, 0.0
            %v410 = vadd.f32 %v408, %v409
            %411 = vadd.xlane.f32.xlu0 %v410
            %v412 = vpop.xlane.xlu0 %411
            %v413 = vrot.slane %v412, 4
            %v414 = vadd.f32 %v412, %v413
            %v415 = vrot.slane %v414, 2
            %v416 = vadd.f32 %v414, %v415
            %v417 = vrot.slane %v416, 1
            %v418 = vadd.f32 %v416, %v417
            %s419 = vtos %v418
            %v420 = vstv %s419
            %v421 = vmul.f32 %v420, 0.0016666667
            %422 = vst.msk [vmem:[%s246] sm:$0x1] %vm251, %v421
          $region56: #{tpu_custom_call.1} parent=51 // pred_fallthru
            _
          %p423 = scmp.gt.f32.partialorder %s248, 0.0
          // Predicated region
          $region57: #{tpu_custom_call.1} parent=51 // pred_check
            %p424 = pneg %p423
          $region58: #{tpu_custom_call.1} parent=51 // pred_check_branch
            %426 = sbr.rel (%p424) target = $region60
          $region59: #{tpu_custom_call.1} parent=51 // pred_region
            %v427 = vmul.f32 %v357, %v357
            %v428 = vmul.f32 %v365, %v365
            %v429 = vadd.f32 %v427, %v428
            %v430 = vmul.f32 %v373, %v373
            %v431 = vadd.f32 %v429, %v430
            %v432 = vsel %vm377, 0.0, 1e+16
            %v433 = vsel %vm378, 0.0, 1e+16
            %v436 = vcombine.low %v432, %v433
            %v438 = vunpack.c.l.s4 1966171168
            %v439 = vunpack.c.0.s8 %v438
            %v440 = vlaneseq
            %v441 = vshrl.u32 %v440, 7
            %v442 = vsub.s32 %v439, %v441
            %v443 = vrot.slane %v436, %v442
            %v445 = vunpack.c.l.s4 1966171168
            %v446 = vunpack.c.0.s8 %v445
            %v447 = vlaneseq
            %v448 = vshrl.u32 %v447, 7
            %v449 = vsub.s32 %v446, %v448
            %v450 = vrot.slane %v443, %v449
            %v452 = vadd.f32 %v431, %v450
            %v453 = vmul.f32 %v333, %v333
            %v454 = vmul.f32 %v341, %v341
            %v455 = vadd.f32 %v453, %v454
            %v456 = vmul.f32 %v349, %v349
            %v457 = vadd.f32 %v455, %v456
            %v458 = vmul.f32 %v357, -2.0
            %v459 = vlaneseq
            %vm460 = vcmp.ge.s32.totalorder %v459, 0
            %vm461 = vcmp.lt.s32.totalorder %v459, 256
            %vm462 = vmand %vm460, %vm461
            %463 = vst.msk [vmem:[#allocation2] ss:$8 sm:$0x3] %vm462, %v458
            %464 = vst.msk [vmem:[#allocation2] ss:$8 sm:$0x0] %vm462, %v458
            %v465 = vmul.f32 %v365, -2.0
            %s466 = scalar_lea.vmem [#allocation2], 1
            %467 = vst.msk [vmem:[%s466] ss:$8 sm:$0x3] %vm462, %v465
            %468 = vst.msk [vmem:[%s466] ss:$8 sm:$0x0] %vm462, %v465
            %v469 = vmul.f32 %v373, -2.0
            %s470 = scalar_lea.vmem [#allocation2], 2
            %471 = vst.msk [vmem:[%s470] ss:$8 sm:$0x3] %vm462, %v469
            %472 = vst.msk [vmem:[%s470] ss:$8 sm:$0x0] %vm462, %v469
            %s473 = scalar_lea.vmem [#allocation2], 3
            %474 = vst.msk [vmem:[%s473] ss:$8 sm:$0x3] %vm462, %v452
            %475 = vst.msk [vmem:[%s473] ss:$8 sm:$0x0] %vm462, %v452
            %s476 = scalar_lea.vmem [#allocation2], 4
            %477 = vst.msk [vmem:[%s476] ss:$8 sm:$0x3] %vm462, 1.0
            %478 = vst.msk [vmem:[%s476] ss:$8 sm:$0x0] %vm462, 1.0
            %479 = vst [vmem:[#allocation2] sm:$0xe0] 0.0
            %480 = vst [vmem:[#allocation2 + $0x8] sm:$0xe0] 0.0
            %481 = vst.msk [vmem:[#allocation3] ss:$8 sm:$0x3] %vm462, %v333
            %482 = vst.msk [vmem:[#allocation3] ss:$8 sm:$0x0] %vm462, %v333
            %s483 = scalar_lea.vmem [#allocation3], 1
            %484 = vst.msk [vmem:[%s483] ss:$8 sm:$0x3] %vm462, %v341
            %485 = vst.msk [vmem:[%s483] ss:$8 sm:$0x0] %vm462, %v341
            %s486 = scalar_lea.vmem [#allocation3], 2
            %487 = vst.msk [vmem:[%s486] ss:$8 sm:$0x3] %vm462, %v349
            %488 = vst.msk [vmem:[%s486] ss:$8 sm:$0x0] %vm462, %v349
            %s489 = scalar_lea.vmem [#allocation3], 3
            %490 = vst.msk [vmem:[%s489] ss:$8 sm:$0x3] %vm462, 1.0
            %491 = vst.msk [vmem:[%s489] ss:$8 sm:$0x0] %vm462, 1.0
            %s492 = scalar_lea.vmem [#allocation3], 4
            %493 = vst.msk [vmem:[%s492] ss:$8 sm:$0x3] %vm462, %v457
            %494 = vst.msk [vmem:[%s492] ss:$8 sm:$0x0] %vm462, %v457
            %495 = vst [vmem:[#allocation3] sm:$0xe0] 0.0
            %496 = vst [vmem:[#allocation3 + $0x8] sm:$0xe0] 0.0
            %v497 = vld [vmem:[#allocation3] sm:$0xff]
            %v498 = vld [vmem:[#allocation3 + $0x8] sm:$0xff]
            %v499 = vld [vmem:[#allocation2] sm:$0xff]
            %v500 = vld [vmem:[#allocation2 + $0x8] sm:$0xff]
            %501 = vxpose.xlu0.b32.start [1/16] %v499, 128
            %502 = vxpose.xlu0.b32.cont [2/16] 0.0, 128
            %503 = vxpose.xlu0.b32.cont [3/16] 0.0, 128
            %504 = vxpose.xlu0.b32.cont [4/16] 0.0, 128
            %505 = vxpose.xlu0.b32.cont [5/16] 0.0, 128
            %506 = vxpose.xlu0.b32.cont [6/16] 0.0, 128
            %507 = vxpose.xlu0.b32.cont [7/16] 0.0, 128
            %508 = vxpose.xlu0.b32.cont [8/16] 0.0, 128
            %509 = vxpose.xlu0.b32.cont [9/16] 0.0, 128
            %510 = vxpose.xlu0.b32.cont [10/16] 0.0, 128
            %511 = vxpose.xlu0.b32.cont [11/16] 0.0, 128
            %512 = vxpose.xlu0.b32.cont [12/16] 0.0, 128
            %513 = vxpose.xlu0.b32.cont [13/16] 0.0, 128
            %514 = vxpose.xlu0.b32.cont [14/16] 0.0, 128
            %515 = vxpose.xlu0.b32.cont [15/16] 0.0, 128
            %516 = vxpose.xlu0.b32.end [16/16] 0.0, 128
            %v517 = vpop.trf.xlu0
            %v518 = vpop.trf.xlu0
            %v519 = vpop.trf.xlu0
            %v520 = vpop.trf.xlu0
            %v521 = vpop.trf.xlu0
            %v522 = vpop.trf.xlu0
            %v523 = vpop.trf.xlu0
            %v524 = vpop.trf.xlu0
            %v525 = vpop.trf.xlu0
            %v526 = vpop.trf.xlu0
            %v527 = vpop.trf.xlu0
            %v528 = vpop.trf.xlu0
            %v529 = vpop.trf.xlu0
            %v530 = vpop.trf.xlu0
            %v531 = vpop.trf.xlu0
            %v532 = vpop.trf.xlu0
            %533 = vxpose.xlu0.b32.start [1/16] %v500, 128
            %534 = vxpose.xlu0.b32.cont [2/16] 0.0, 128
            %535 = vxpose.xlu0.b32.cont [3/16] 0.0, 128
            %536 = vxpose.xlu0.b32.cont [4/16] 0.0, 128
            %537 = vxpose.xlu0.b32.cont [5/16] 0.0, 128
            %538 = vxpose.xlu0.b32.cont [6/16] 0.0, 128
            %539 = vxpose.xlu0.b32.cont [7/16] 0.0, 128
            %540 = vxpose.xlu0.b32.cont [8/16] 0.0, 128
            %541 = vxpose.xlu0.b32.cont [9/16] 0.0, 128
            %542 = vxpose.xlu0.b32.cont [10/16] 0.0, 128
            %543 = vxpose.xlu0.b32.cont [11/16] 0.0, 128
            %544 = vxpose.xlu0.b32.cont [12/16] 0.0, 128
            %545 = vxpose.xlu0.b32.cont [13/16] 0.0, 128
            %546 = vxpose.xlu0.b32.cont [14/16] 0.0, 128
            %547 = vxpose.xlu0.b32.cont [15/16] 0.0, 128
            %548 = vxpose.xlu0.b32.end [16/16] 0.0, 128
            %v549 = vpop.trf.xlu0
            %v550 = vpop.trf.xlu0
            %v551 = vpop.trf.xlu0
            %v552 = vpop.trf.xlu0
            %v553 = vpop.trf.xlu0
            %v554 = vpop.trf.xlu0
            %v555 = vpop.trf.xlu0
            %v556 = vpop.trf.xlu0
            %v557 = vpop.trf.xlu0
            %v558 = vpop.trf.xlu0
            %v559 = vpop.trf.xlu0
            %v560 = vpop.trf.xlu0
            %v561 = vpop.trf.xlu0
            %v562 = vpop.trf.xlu0
            %v563 = vpop.trf.xlu0
            %v564 = vpop.trf.xlu0
            %vm565 = vcmask 64512
            %v567 = vsel %vm565, %v517, 0
            %v570 = vsel %vm565, %v518, 0
            %v573 = vsel %vm565, %v519, 0
            %v576 = vsel %vm565, %v520, 0
            %v579 = vsel %vm565, %v521, 0
            %v582 = vsel %vm565, %v522, 0
            %v585 = vsel %vm565, %v523, 0
            %v588 = vsel %vm565, %v524, 0
            %v591 = vsel %vm565, %v525, 0
            %v594 = vsel %vm565, %v526, 0
            %v597 = vsel %vm565, %v527, 0
            %v600 = vsel %vm565, %v528, 0
            %v603 = vsel %vm565, %v529, 0
            %v606 = vsel %vm565, %v530, 0
            %v609 = vsel %vm565, %v531, 0
            %v612 = vsel %vm565, %v532, 0
            %v615 = vsel %vm565, %v549, 0
            %v618 = vsel %vm565, %v550, 0
            %v621 = vsel %vm565, %v551, 0
            %v624 = vsel %vm565, %v552, 0
            %v627 = vsel %vm565, %v553, 0
            %v630 = vsel %vm565, %v554, 0
            %v633 = vsel %vm565, %v555, 0
            %v636 = vsel %vm565, %v556, 0
            %v639 = vsel %vm565, %v557, 0
            %v642 = vsel %vm565, %v558, 0
            %v645 = vsel %vm565, %v559, 0
            %v648 = vsel %vm565, %v560, 0
            %v651 = vsel %vm565, %v561, 0
            %v654 = vsel %vm565, %v562, 0
            %v657 = vsel %vm565, %v563, 0
            %v660 = vsel %vm565, %v564, 0
            %662 = vmatprep.subr.mxu0 %v498
            %663 = vmatpush1.msra.mxu0 %v497
            %664 = vmatprep.subr.mxu0 0.0
            %665 = vmatpush1.msra.mxu0 0.0
            %666 = vmatprep.subr.mxu0 0.0
            %667 = vmatpush1.msra.mxu0 0.0
            %668 = vmatprep.subr.mxu0 0.0
            %669 = vmatpush1.msra.mxu0 0.0
            %670 = vmatprep.subr.mxu0 0.0
            %671 = vmatpush1.msra.mxu0 0.0
            %672 = vmatprep.subr.mxu0 0.0
            %673 = vmatpush1.msra.mxu0 0.0
            %674 = vmatprep.subr.mxu0 0.0
            %675 = vmatpush1.msra.mxu0 0.0
            %676 = vmatprep.subr.mxu0 0.0
            %677 = vmatpush1.msra.mxu0 0.0
            %678 = vmatprep.subr.mxu0 0.0
            %679 = vmatpush1.msra.mxu0 0.0
            %680 = vmatprep.subr.mxu0 0.0
            %681 = vmatpush1.msra.mxu0 0.0
            %682 = vmatprep.subr.mxu0 0.0
            %683 = vmatpush1.msra.mxu0 0.0
            %684 = vmatprep.subr.mxu0 0.0
            %685 = vmatpush1.msra.mxu0 0.0
            %686 = vmatprep.subr.mxu0 0.0
            %687 = vmatpush1.msra.mxu0 0.0
            %688 = vmatprep.subr.mxu0 0.0
            %689 = vmatpush1.msra.mxu0 0.0
            %690 = vmatprep.subr.mxu0 0.0
            %691 = vmatpush1.msra.mxu0 0.0
            %692 = vmatprep.subr.mxu0 0.0
            %693 = vmatpush1.msra.mxu0 0.0
            %694 = vmatprep.subr.mxu0 0.0
            %695 = vmatpush1.msra.mxu0 0.0
            %696 = vmatprep.subr.mxu0 0.0
            %697 = vmatpush1.msra.mxu0 0.0
            %698 = vmatprep.subr.mxu0 0.0
            %699 = vmatpush1.msra.mxu0 0.0
            %700 = vmatprep.subr.mxu0 0.0
            %701 = vmatpush1.msra.mxu0 0.0
            %702 = vmatprep.subr.mxu0 0.0
            %703 = vmatpush1.msra.mxu0 0.0
            %704 = vmatprep.subr.mxu0 0.0
            %705 = vmatpush1.msra.mxu0 0.0
            %706 = vmatprep.subr.mxu0 0.0
            %707 = vmatpush1.msra.mxu0 0.0
            %708 = vmatprep.subr.mxu0 0.0
            %709 = vmatpush1.msra.mxu0 0.0
            %710 = vmatprep.subr.mxu0 0.0
            %711 = vmatpush1.msra.mxu0 0.0
            %712 = vmatprep.subr.mxu0 0.0
            %713 = vmatpush1.msra.mxu0 0.0
            %714 = vmatprep.subr.mxu0 0.0
            %715 = vmatpush1.msra.mxu0 0.0
            %716 = vmatprep.subr.mxu0 0.0
            %717 = vmatpush1.msra.mxu0 0.0
            %718 = vmatprep.subr.mxu0 0.0
            %719 = vmatpush1.msra.mxu0 0.0
            %720 = vmatprep.subr.mxu0 0.0
            %721 = vmatpush1.msra.mxu0 0.0
            %722 = vmatprep.subr.mxu0 0.0
            %723 = vmatpush1.msra.mxu0 0.0
            %724 = vmatprep.subr.mxu0 0.0
            %725 = vmatpush1.msra.mxu0 0.0
            %726 = vmatprep.mubr.f32.mxu0 0.0
            %727 = vmatmul.mubr.f32.gmra.mrb[0].mxu0 %v567
            %v728 = vpop.f32.mrb[0].mxu0
            %v729 = vadd.f32 0.0, %v728
            %v730 = vpop.f32.mrb[0].mxu0
            %v731 = vadd.f32 0.0, %v730
            %732 = vmatprep.mubr.f32.mxu0 0.0
            %733 = vmatmul.mubr.f32.gmra.mrb[0].mxu0 %v570
            %v734 = vpop.f32.mrb[0].mxu0
            %v735 = vadd.f32 0.0, %v734
            %v736 = vpop.f32.mrb[0].mxu0
            %v737 = vadd.f32 0.0, %v736
            %738 = vmatprep.mubr.f32.mxu0 0.0
            %739 = vmatmul.mubr.f32.gmra.mrb[0].mxu0 %v573
            %v740 = vpop.f32.mrb[0].mxu0
            %v741 = vadd.f32 0.0, %v740
            %v742 = vpop.f32.mrb[0].mxu0
            %v743 = vadd.f32 0.0, %v742
            %744 = vmatprep.mubr.f32.mxu0 0.0
            %745 = vmatmul.mubr.f32.gmra.mrb[0].mxu0 %v576
            %v746 = vpop.f32.mrb[0].mxu0
            %v747 = vadd.f32 0.0, %v746
            %v748 = vpop.f32.mrb[0].mxu0
            %v749 = vadd.f32 0.0, %v748
            %750 = vmatprep.mubr.f32.mxu0 0.0
            %751 = vmatmul.mubr.f32.gmra.mrb[0].mxu0 %v579
            %v752 = vpop.f32.mrb[0].mxu0
            %v753 = vadd.f32 0.0, %v752
            %v754 = vpop.f32.mrb[0].mxu0
            %v755 = vadd.f32 0.0, %v754
            %756 = vmatprep.mubr.f32.mxu0 0.0
            %757 = vmatmul.mubr.f32.gmra.mrb[0].mxu0 %v582
            %v758 = vpop.f32.mrb[0].mxu0
            %v759 = vadd.f32 0.0, %v758
            %v760 = vpop.f32.mrb[0].mxu0
            %v761 = vadd.f32 0.0, %v760
            %762 = vmatprep.mubr.f32.mxu0 0.0
            %763 = vmatmul.mubr.f32.gmra.mrb[0].mxu0 %v585
            %v764 = vpop.f32.mrb[0].mxu0
            %v765 = vadd.f32 0.0, %v764
            %v766 = vpop.f32.mrb[0].mxu0
            %v767 = vadd.f32 0.0, %v766
            %768 = vmatprep.mubr.f32.mxu0 0.0
            %769 = vmatmul.mubr.f32.gmra.mrb[0].mxu0 %v588
            %v770 = vpop.f32.mrb[0].mxu0
            %v771 = vadd.f32 0.0, %v770
            %v772 = vpop.f32.mrb[0].mxu0
            %v773 = vadd.f32 0.0, %v772
            %774 = vmatprep.mubr.f32.mxu0 0.0
            %775 = vmatmul.mubr.f32.gmra.mrb[0].mxu0 %v591
            %v776 = vpop.f32.mrb[0].mxu0
            %v777 = vadd.f32 0.0, %v776
            %v778 = vpop.f32.mrb[0].mxu0
            %v779 = vadd.f32 0.0, %v778
            %780 = vmatprep.mubr.f32.mxu0 0.0
            %781 = vmatmul.mubr.f32.gmra.mrb[0].mxu0 %v594
            %v782 = vpop.f32.mrb[0].mxu0
            %v783 = vadd.f32 0.0, %v782
            %v784 = vpop.f32.mrb[0].mxu0
            %v785 = vadd.f32 0.0, %v784
            %786 = vmatprep.mubr.f32.mxu0 0.0
            %787 = vmatmul.mubr.f32.gmra.mrb[0].mxu0 %v597
            %v788 = vpop.f32.mrb[0].mxu0
            %v789 = vadd.f32 0.0, %v788
            %v790 = vpop.f32.mrb[0].mxu0
            %v791 = vadd.f32 0.0, %v790
            %792 = vmatprep.mubr.f32.mxu0 0.0
            %793 = vmatmul.mubr.f32.gmra.mrb[0].mxu0 %v600
            %v794 = vpop.f32.mrb[0].mxu0
            %v795 = vadd.f32 0.0, %v794
            %v796 = vpop.f32.mrb[0].mxu0
            %v797 = vadd.f32 0.0, %v796
            %798 = vmatprep.mubr.f32.mxu0 0.0
            %799 = vmatmul.mubr.f32.gmra.mrb[0].mxu0 %v603
            %v800 = vpop.f32.mrb[0].mxu0
            %v801 = vadd.f32 0.0, %v800
            %v802 = vpop.f32.mrb[0].mxu0
            %v803 = vadd.f32 0.0, %v802
            %804 = vmatprep.mubr.f32.mxu0 0.0
            %805 = vmatmul.mubr.f32.gmra.mrb[0].mxu0 %v606
            %v806 = vpop.f32.mrb[0].mxu0
            %v807 = vadd.f32 0.0, %v806
            %v808 = vpop.f32.mrb[0].mxu0
            %v809 = vadd.f32 0.0, %v808
            %810 = vmatprep.mubr.f32.mxu0 0.0
            %811 = vmatmul.mubr.f32.gmra.mrb[0].mxu0 %v609
            %v812 = vpop.f32.mrb[0].mxu0
            %v813 = vadd.f32 0.0, %v812
            %v814 = vpop.f32.mrb[0].mxu0
            %v815 = vadd.f32 0.0, %v814
            %816 = vmatprep.mubr.f32.mxu0 0.0
            %817 = vmatmul.mubr.f32.gmra.mrb[0].mxu0 %v612
            %v818 = vpop.f32.mrb[0].mxu0
            %v819 = vadd.f32 0.0, %v818
            %v820 = vpop.f32.mrb[0].mxu0
            %v821 = vadd.f32 0.0, %v820
            %822 = vmatprep.mubr.f32.mxu0 0.0
            %823 = vmatmul.mubr.f32.gmra.mrb[0].mxu0 %v615
            %v824 = vpop.f32.mrb[0].mxu0
            %v825 = vadd.f32 0.0, %v824
            %v826 = vpop.f32.mrb[0].mxu0
            %v827 = vadd.f32 0.0, %v826
            %828 = vmatprep.mubr.f32.mxu0 0.0
            %829 = vmatmul.mubr.f32.gmra.mrb[0].mxu0 %v618
            %v830 = vpop.f32.mrb[0].mxu0
            %v831 = vadd.f32 0.0, %v830
            %v832 = vpop.f32.mrb[0].mxu0
            %v833 = vadd.f32 0.0, %v832
            %834 = vmatprep.mubr.f32.mxu0 0.0
            %835 = vmatmul.mubr.f32.gmra.mrb[0].mxu0 %v621
            %v836 = vpop.f32.mrb[0].mxu0
            %v837 = vadd.f32 0.0, %v836
            %v838 = vpop.f32.mrb[0].mxu0
            %v839 = vadd.f32 0.0, %v838
            %840 = vmatprep.mubr.f32.mxu0 0.0
            %841 = vmatmul.mubr.f32.gmra.mrb[0].mxu0 %v624
            %v842 = vpop.f32.mrb[0].mxu0
            %v843 = vadd.f32 0.0, %v842
            %v844 = vpop.f32.mrb[0].mxu0
            %v845 = vadd.f32 0.0, %v844
            %846 = vmatprep.mubr.f32.mxu0 0.0
            %847 = vmatmul.mubr.f32.gmra.mrb[0].mxu0 %v627
            %v848 = vpop.f32.mrb[0].mxu0
            %v849 = vadd.f32 0.0, %v848
            %v850 = vpop.f32.mrb[0].mxu0
            %v851 = vadd.f32 0.0, %v850
            %852 = vmatprep.mubr.f32.mxu0 0.0
            %853 = vmatmul.mubr.f32.gmra.mrb[0].mxu0 %v630
            %v854 = vpop.f32.mrb[0].mxu0
            %v855 = vadd.f32 0.0, %v854
            %v856 = vpop.f32.mrb[0].mxu0
            %v857 = vadd.f32 0.0, %v856
            %858 = vmatprep.mubr.f32.mxu0 0.0
            %859 = vmatmul.mubr.f32.gmra.mrb[0].mxu0 %v633
            %v860 = vpop.f32.mrb[0].mxu0
            %v861 = vadd.f32 0.0, %v860
            %v862 = vpop.f32.mrb[0].mxu0
            %v863 = vadd.f32 0.0, %v862
            %864 = vmatprep.mubr.f32.mxu0 0.0
            %865 = vmatmul.mubr.f32.gmra.mrb[0].mxu0 %v636
            %v866 = vpop.f32.mrb[0].mxu0
            %v867 = vadd.f32 0.0, %v866
            %v868 = vpop.f32.mrb[0].mxu0
            %v869 = vadd.f32 0.0, %v868
            %870 = vmatprep.mubr.f32.mxu0 0.0
            %871 = vmatmul.mubr.f32.gmra.mrb[0].mxu0 %v639
            %v872 = vpop.f32.mrb[0].mxu0
            %v873 = vadd.f32 0.0, %v872
            %v874 = vpop.f32.mrb[0].mxu0
            %v875 = vadd.f32 0.0, %v874
            %876 = vmatprep.mubr.f32.mxu0 0.0
            %877 = vmatmul.mubr.f32.gmra.mrb[0].mxu0 %v642
            %v878 = vpop.f32.mrb[0].mxu0
            %v879 = vadd.f32 0.0, %v878
            %v880 = vpop.f32.mrb[0].mxu0
            %v881 = vadd.f32 0.0, %v880
            %882 = vmatprep.mubr.f32.mxu0 0.0
            %883 = vmatmul.mubr.f32.gmra.mrb[0].mxu0 %v645
            %v884 = vpop.f32.mrb[0].mxu0
            %v885 = vadd.f32 0.0, %v884
            %v886 = vpop.f32.mrb[0].mxu0
            %v887 = vadd.f32 0.0, %v886
            %888 = vmatprep.mubr.f32.mxu0 0.0
            %889 = vmatmul.mubr.f32.gmra.mrb[0].mxu0 %v648
            %v890 = vpop.f32.mrb[0].mxu0
            %v891 = vadd.f32 0.0, %v890
            %v892 = vpop.f32.mrb[0].mxu0
            %v893 = vadd.f32 0.0, %v892
            %894 = vmatprep.mubr.f32.mxu0 0.0
            %895 = vmatmul.mubr.f32.gmra.mrb[0].mxu0 %v651
            %v896 = vpop.f32.mrb[0].mxu0
            %v897 = vadd.f32 0.0, %v896
            %v898 = vpop.f32.mrb[0].mxu0
            %v899 = vadd.f32 0.0, %v898
            %900 = vmatprep.mubr.f32.mxu0 0.0
            %901 = vmatmul.mubr.f32.gmra.mrb[0].mxu0 %v654
            %v902 = vpop.f32.mrb[0].mxu0
            %v903 = vadd.f32 0.0, %v902
            %v904 = vpop.f32.mrb[0].mxu0
            %v905 = vadd.f32 0.0, %v904
            %906 = vmatprep.mubr.f32.mxu0 0.0
            %907 = vmatmul.mubr.f32.gmra.mrb[0].mxu0 %v657
            %v908 = vpop.f32.mrb[0].mxu0
            %v909 = vadd.f32 0.0, %v908
            %v910 = vpop.f32.mrb[0].mxu0
            %v911 = vadd.f32 0.0, %v910
            %912 = vmatprep.mubr.f32.mxu0 0.0
            %913 = vmatmul.mubr.f32.gmra.mrb[0].mxu0 %v660
            %v914 = vpop.f32.mrb[0].mxu0
            %v915 = vadd.f32 0.0, %v914
            %v916 = vpop.f32.mrb[0].mxu0
            %v917 = vadd.f32 0.0, %v916
            %918 = vdwg.mxu0
            %v919 = vmin.f32 %v729, %v741
            %v920 = vmin.f32 %v735, %v747
            %v921 = vmin.f32 %v919, %v753
            %v922 = vmin.f32 %v920, %v759
            %v923 = vmin.f32 %v921, %v765
            %v924 = vmin.f32 %v922, %v771
            %v925 = vmin.f32 %v923, %v777
            %v926 = vmin.f32 %v924, %v783
            %v927 = vmin.f32 %v925, %v789
            %v928 = vmin.f32 %v926, %v795
            %v929 = vmin.f32 %v927, %v801
            %v930 = vmin.f32 %v928, %v807
            %v931 = vmin.f32 %v929, %v813
            %v932 = vmin.f32 %v930, %v819
            %v933 = vmin.f32 %v931, %v825
            %v934 = vmin.f32 %v932, %v831
            %v935 = vmin.f32 %v933, %v837
            %v936 = vmin.f32 %v934, %v843
            %v937 = vmin.f32 %v935, %v849
            %v938 = vmin.f32 %v936, %v855
            %v939 = vmin.f32 %v937, %v861
            %v940 = vmin.f32 %v938, %v867
            %v941 = vmin.f32 %v939, %v873
            %v942 = vmin.f32 %v940, %v879
            %v943 = vmin.f32 %v941, %v885
            %v944 = vmin.f32 %v942, %v891
            %v945 = vmin.f32 %v943, %v897
            %v946 = vmin.f32 %v944, %v903
            %v947 = vmin.f32 %v945, %v909
            %v948 = vmin.f32 %v946, %v915
            %v949 = vmin.f32 %v947, %v948
            %v950 = vrot.slane %v949, 4
            %v951 = vmin.f32 %v949, %v950
            %v952 = vrot.slane %v951, 2
            %v953 = vmin.f32 %v951, %v952
            %v954 = vrot.slane %v953, 1
            %v955 = vmin.f32 %v953, %v954
            %v956 = vmin.f32 %v731, %v743
            %v957 = vmin.f32 %v737, %v749
            %v958 = vmin.f32 %v956, %v755
            %v959 = vmin.f32 %v957, %v761
            %v960 = vmin.f32 %v958, %v767
            %v961 = vmin.f32 %v959, %v773
            %v962 = vmin.f32 %v960, %v779
            %v963 = vmin.f32 %v961, %v785
            %v964 = vmin.f32 %v962, %v791
            %v965 = vmin.f32 %v963, %v797
            %v966 = vmin.f32 %v964, %v803
            %v967 = vmin.f32 %v965, %v809
            %v968 = vmin.f32 %v966, %v815
            %v969 = vmin.f32 %v967, %v821
            %v970 = vmin.f32 %v968, %v827
            %v971 = vmin.f32 %v969, %v833
            %v972 = vmin.f32 %v970, %v839
            %v973 = vmin.f32 %v971, %v845
            %v974 = vmin.f32 %v972, %v851
            %v975 = vmin.f32 %v973, %v857
            %v976 = vmin.f32 %v974, %v863
            %v977 = vmin.f32 %v975, %v869
            %v978 = vmin.f32 %v976, %v875
            %v979 = vmin.f32 %v977, %v881
            %v980 = vmin.f32 %v978, %v887
            %v981 = vmin.f32 %v979, %v893
            %v982 = vmin.f32 %v980, %v899
            %v983 = vmin.f32 %v981, %v905
            %v984 = vmin.f32 %v982, %v911
            %v985 = vmin.f32 %v983, %v917
            %v986 = vmin.f32 %v984, %v985
            %v987 = vrot.slane %v986, 4
            %v988 = vmin.f32 %v986, %v987
            %v989 = vrot.slane %v988, 2
            %v990 = vmin.f32 %v988, %v989
            %v991 = vrot.slane %v990, 1
            %v992 = vmin.f32 %v990, %v991
            %v993 = vmin.f32 %v955, 1e+16
            %v994 = vmin.f32 %v992, 1e+16
            %v995 = vstv 0
            %v996 = vadd.s32 %v375, %v995
            %v997 = vadd.s32 %v376, %v995
            %vm998 = vcmp.lt.s32.totalorder %v996, 200
            %vm999 = vcmp.lt.s32.totalorder %v997, 200
            %v1000 = vmul.f32 %v993, 0.5
            %v1001 = vmul.f32 %v994, 0.5
            %v1002 = vsub.f32 %v1000, 0.001
            %v1003 = vsub.f32 %v1001, 0.001
            %v1004 = vmax.f32 %v1002, 0.0
            %v1005 = vmax.f32 %v1003, 0.0
            %v1006 = vsel %vm998, %v1004, 0.0
            %v1007 = vsel %vm999, %v1005, 0.0
            %vm1008 = vcmask 1040384
            %v1009 = vsel %vm1008, %v1006, 0.0
            %v1010 = vsel %vm1008, %v1007, 0.0
            %v1011 = vadd.f32 %v1009, %v1010
            %1012 = vadd.xlane.f32.xlu0 %v1011
            %v1013 = vpop.xlane.xlu0 %1012
            %v1014 = vrot.slane %v1013, 4
            %v1015 = vadd.f32 %v1013, %v1014
            %v1016 = vrot.slane %v1015, 2
            %v1017 = vadd.f32 %v1015, %v1016
            %v1018 = vrot.slane %v1017, 1
            %v1019 = vadd.f32 %v1017, %v1018
            %s1020 = vtos %v1019
            %v1021 = vstv %s1020
            %v1022 = vadd.f32 %v1021, 0.0
            %v1023 = vmul.f32 %v1022, 0.0016666667
            %1024 = vst.msk [vmem:[%s246] sm:$0x1] %vm251, %v1023
          $region60: #{tpu_custom_call.1} parent=51 // pred_fallthru
            _
        $region52: #{tpu_custom_call.1} parent=35 // pred_fallthru
          _
        %p1025 = scmp.lt.s32.totalorder %s24, 2
        %s1026 = scalar_select %p1025, %s24, 2
        %s1027 = scalar_lea.vmem %s5, %s1026
        // Predicated region
        $region61: #{tpu_custom_call.1} parent=35 // pred_check
          %p1028 = pneg %p133
        $region62: #{tpu_custom_call.1} parent=35 // pred_check_branch
          %1030 = sbr.rel (%p1028) target = $region64
        $region63: #{tpu_custom_call.1} parent=35 // pred_region
          _
        $region64: #{tpu_custom_call.1} parent=35 // pred_fallthru
          _
      $region36: #{tpu_custom_call.1} parent=5 // pred_fallthru
        _
      %p1031 = scmp.le.s32.totalorder 2, %s19
      // Predicated region
      $region65: #{tpu_custom_call.1} parent=5 // pred_check
        %p1032 = pneg %p1031
      $region66: #{tpu_custom_call.1} parent=5 // pred_check_branch
        %1034 = sbr.rel (%p1032) target = $region68
      $region67: #{tpu_custom_call.1} parent=5 // pred_region
        %s1035 = ssub.s32 %s19, 2
        // Predicated region
        $region69: #{tpu_custom_call.1} parent=67 // pred_check
          %p1036 = pneg %p139
        $region70: #{tpu_custom_call.1} parent=67 // pred_check_branch
          %1038 = sbr.rel (%p1036) target = $region72
        $region71: #{tpu_custom_call.1} parent=67 // pred_region
          %p1039 = scmp.lt.s32.totalorder %s25, 2
          %s1040 = scalar_select %p1039, %s25, 2
          %s1041 = scalar_lea.vmem %s5, %s1040
        $region72: #{tpu_custom_call.1} parent=67 // pred_fallthru
          _
      $region68: #{tpu_custom_call.1} parent=5 // pred_fallthru
        _
    $region6: #{tpu_custom_call.1} parent=1 // loop_footer
      %s23 = sadd.s32 1, %s19
    $region7: #{tpu_custom_call.1} parent=1 // loop_footer_branch
      %18 = sbr.rel target = $region3
    $region8: #{tpu_custom_call.1} parent=1 // loop_exit
      _
    %1042 = vsyncpa [#allocation7], 1
    %s1043 = scalar_lea.sflag [#allocation7], 1
    %1044 = vsyncpa %s1043, 1
    %1045 = vsyncpa [#allocation9], 1

</llo_original>
